<compile_context>
chip_gen: v5e
topology: v5e:2x2
jax: 0.10.0
libtpu: 0.0.40
codegen_flags: <defaults>
</compile_context>

<pallas_src>
import functools

import jax
import jax.numpy as jnp
from jax.experimental import pallas as pl
from jax.experimental.pallas import tpu as pltpu


# ----------------------------- Pallas kernel --------------------------------


def _make_decoder_kernel(num_layers: int, hidden_dim: int, output_dim: int, in_pad: int):
    L, H, D, P = num_layers, hidden_dim, output_dim, in_pad

    def kernel(x_ref, h_ref, c_ref, enc_ref,
               lstm_wx_ref, lstm_wh_ref, lstm_b_ref,
               head_w_ref, head_vec_ref,
               fc2w_ref, fc2b_ref, fc3w_ref, fc3b_ref,
               pred_ref, hout_ref, cout_ref, attn_out_ref,
               h_state, c_state, eproj_ref):
        t = pl.program_id(0)
        B, S, _ = enc_ref.shape

        # head_vec is one tiny (3, H) tile: load once, value-slice (rows 0/1/2 are
        # not sublane-aligned, so ref-slicing them buys nothing).
        head_vec = head_vec_ref[...]
        attn_b = head_vec[0:1, :]           # (1, H)
        v_row = head_vec[1:2, :]            # (1, H)  attn_v as a lane-dense row
        fc1_b = head_vec[2:3, :]            # (1, H)

        @pl.when(t == 0)
        def _init():
            # Seed the resident recurrent state from the (aliased) inputs.  The
            # h_ref / c_ref inputs are read ONLY here; hout/cout are written only
            # at the last step, so the input/output aliasing cannot clobber state.
            h_state[...] = h_ref[...]
            c_state[...] = c_ref[...]
            # Hoisted encoder projection (+ attention bias): depends only on
            # encoder_outputs, so compute once per sequence, not once per step.
            w_e = head_w_ref[H:2 * H, :]                                   # (H, H)
            enc2d = enc_ref[...].reshape(B * S, H)
            eproj_ref[...] = (
                jnp.dot(enc2d, w_e, preferred_element_type=jnp.float32) + attn_b
            ).reshape(B, S, H)

        # ---- per-step state (read everything before any write) ----
        h_all = h_state[...]                 # (L, B, H)  state after previous step
        c_all = c_state[...]                 # (L, B, H)
        x_t = x_ref[0]                       # (B, P), zero-padded past output_dim

        # ---------------- Bahdanau attention ----------------
        w_h = head_w_ref[0:H, :]                                           # (H, H)
        h_part = jnp.dot(h_all[L - 1], w_h,
                         preferred_element_type=jnp.float32)               # (B, H)
        energy = jnp.tanh(eproj_ref[...] + h_part[:, None, :])             # (B, S, H)
        scores = jnp.sum(energy * v_row[None, :, :], axis=-1)              # (B, S)

        scores_max = jnp.max(scores, axis=-1, keepdims=True)
        exps = jnp.exp(scores - scores_max)
        denom = jnp.sum(exps, axis=-1, keepdims=True)
        attn = exps / denom                   # exact normalization (review item)
        attn_out_ref[0] = attn

        # weighted = bmm(attn.unsqueeze(1), enc).squeeze(1) as a VPU
        # broadcast-multiply + reduction (keeps the MXU free of tiny matvecs).
        weighted = jnp.sum(attn[:, :, None] * enc_ref[...], axis=1)        # (B, H)

        # ---------------- single-step multi-layer LSTM ----------------
        layer_in = x_t                        # (B, P) for layer 0, (B, H) after
        for l in range(L):
            k_in = P if l == 0 else H
            h_prev = h_all[l]                 # (B, H)
            c_prev = c_all[l]                 # (B, H)
            # Split matmul (x @ Wx + h @ Wh): no lane-axis concatenation.
            gates = (jnp.dot(layer_in, lstm_wx_ref[l][:k_in, :],
                             preferred_element_type=jnp.float32)
                     + jnp.dot(h_prev, lstm_wh_ref[l],
                               preferred_element_type=jnp.float32)
                     + lstm_b_ref[l])                                       # (B, 4H)
            # Gate columns packed as [i, f, o, g]; 4H = one lane tile.  Two
            # full-vreg EUP activations + one lane-mask select, no pre-activation
            # 32-lane slicing.
            sig = jax.nn.sigmoid(gates)
            tnh = jnp.tanh(gates)
            lane = jax.lax.broadcasted_iota(jnp.int32, gates.shape, 1)
            acts = jnp.where(lane < 3 * H, sig, tnh)
            i_g = acts[:, 0 * H:1 * H]
            f_g = acts[:, 1 * H:2 * H]
            o_g = acts[:, 2 * H:3 * H]
            g_g = acts[:, 3 * H:4 * H]
            c_new = f_g * c_prev + i_g * g_g
            h_new = o_g * jnp.tanh(c_new)
            h_state[l] = h_new
            c_state[l] = c_new
            layer_in = h_new                  # feed next layer

        lstm_out = layer_in                   # (B, H) == output.squeeze(1)

        # ---------------- FC head ----------------
        # cat([lstm_out, weighted]) @ fc1_w split into two matmuls (no lane concat)
        fc1_w_top = head_w_ref[2 * H:3 * H, :]     # acts on lstm_out
        fc1_w_bot = head_w_ref[3 * H:4 * H, :]     # acts on weighted
        fc1 = jax.nn.relu(
            jnp.dot(lstm_out, fc1_w_top, preferred_element_type=jnp.float32)
            + jnp.dot(weighted, fc1_w_bot, preferred_element_type=jnp.float32)
            + fc1_b)
        fc2 = jax.nn.relu(jnp.dot(fc1, fc2w_ref[...],
                                  preferred_element_type=jnp.float32) + fc2b_ref[...])
        pred = jnp.dot(fc2, fc3w_ref[...],
                       preferred_element_type=jnp.float32) + fc3b_ref[...]
        pred_ref[0] = pred

        @pl.when(t == pl.num_programs(0) - 1)
        def _finalize():
            hout_ref[...] = h_state[...]
            cout_ref[...] = c_state[...]

    return kernel


# ----------------------------- parameter packing -----------------------------


def pack_decoder_params(params, *, num_layers, hidden_dim, output_dim):
    """One-time wrapper-side layout plumbing: fuse/stack the many tiny parameter
    arrays into a handful of DMA-friendly inputs, with gate columns reordered to
    [i, f, o, g] so sigmoid/tanh can be applied with one lane mask."""
    L, H, D = num_layers, hidden_dim, output_dim
    P = max(D, H)                         # padded per-layer "input slot" width

    def reorder_gates(w):                 # PyTorch [i, f, g, o] -> [i, f, o, g]
        return jnp.concatenate(
            [w[..., 0:2 * H], w[..., 3 * H:4 * H], w[..., 2 * H:3 * H]], axis=-1)

    wx, wh, b = [], [], []
    for l in range(L):
        in_size = D if l == 0 else H
        w_ih = reorder_gates(params[f"w_ih_{l}"])          # (in_size, 4H)
        w_hh = reorder_gates(params[f"w_hh_{l}"])          # (H, 4H)
        bsum = reorder_gates(params[f"b_ih_{l}"] + params[f"b_hh_{l}"]).reshape(1, 4 * H)
        wx.append(jnp.zeros((P, 4 * H), jnp.float32).at[:in_size, :].set(w_ih))
        wh.append(w_hh)
        b.append(bsum)

    return {
        "lstm_wx": jnp.stack(wx),                                         # (L, P, 4H)
        "lstm_wh": jnp.stack(wh),                                         # (L, H, 4H)
        "lstm_b": jnp.stack(b),                                           # (L, 1, 4H)
        # rows: [0:H] = w_h, [H:2H] = w_e, [2H:3H] = fc1_w(top), [3H:4H] = fc1_w(bot)
        "head_w": jnp.concatenate([params["attn_w"], params["fc1_w"]], axis=0),  # (4H, H)
        # rows: attn_b, attn_v (as a lane-dense row), fc1_b
        "head_vec": jnp.concatenate([params["attn_b"].reshape(1, H),
                                     params["attn_v"].reshape(1, H),
                                     params["fc1_b"].reshape(1, H)], axis=0),     # (3, H)
        "fc2_w": params["fc2_w"], "fc2_b": params["fc2_b"],
        "fc3_w": params["fc3_w"], "fc3_b": params["fc3_b"],
    }


# ----------------------------- wrappers ---------------------------------------


@functools.partial(jax.jit, static_argnames=("num_layers", "hidden_dim", "output_dim"))
def decoder_decode(xs, hidden, cell, encoder_outputs, packed,
                   *, num_layers, hidden_dim, output_dim):
    """Run T teacher-forced decoder steps inside ONE pallas_call.

    xs: (T, B, output_dim).  Semantically identical to iterating the PyTorch
    module forward T times with the given per-step inputs."""
    T, B, _ = xs.shape
    S = encoder_outputs.shape[1]
    L, H, D = num_layers, hidden_dim, output_dim
    P = max(D, H)
    B_pad = max(8, ((B + 7) // 8) * 8)    # at least one full sublane group

    def pad_batch(a, axis):
        if B_pad == B:
            return a
        pad = [(0, 0)] * a.ndim
        pad[axis] = (0, B_pad - B)
        return jnp.pad(a, pad)

    xs_p = pad_batch(xs, 1)
    if P != D:
        xs_p = jnp.pad(xs_p, ((0, 0), (0, 0), (0, P - D)))
    h_p = pad_batch(hidden, 1)
    c_p = pad_batch(cell, 1)
    enc_p = pad_batch(encoder_outputs, 0)

    def step_spec(shape):                 # blocked one timestep at a time (axis 0)
        return pl.BlockSpec((1,) + shape[1:], lambda t: (t, 0, 0))

    def const_spec(shape):                # whole array, resident across all steps
        nd = len(shape)
        return pl.BlockSpec(shape, lambda t, _n=nd: (0,) * _n)

    in_specs = [
        step_spec((T, B_pad, P)),          # x
        const_spec((L, B_pad, H)),         # hidden (read only at t == 0)
        const_spec((L, B_pad, H)),         # cell   (read only at t == 0)
        const_spec((B_pad, S, H)),         # encoder outputs
        const_spec((L, P, 4 * H)),         # lstm_wx
        const_spec((L, H, 4 * H)),         # lstm_wh
        const_spec((L, 1, 4 * H)),         # lstm_b
        const_spec((4 * H, H)),            # head_w
        const_spec((3, H)),                # head_vec
        const_spec((H, H // 2)),           # fc2_w
        const_spec((1, H // 2)),           # fc2_b
        const_spec((H // 2, D)),           # fc3_w
        const_spec((1, D)),                # fc3_b
    ]
    out_specs = (
        step_spec((T, B_pad, D)),          # prediction per step
        const_spec((L, B_pad, H)),         # final hidden (written at t == T-1)
        const_spec((L, B_pad, H)),         # final cell   (written at t == T-1)
        step_spec((T, B_pad, S)),          # attention per step
    )
    out_shape = (
        jax.ShapeDtypeStruct((T, B_pad, D), jnp.float32),
        jax.ShapeDtypeStruct((L, B_pad, H), jnp.float32),
        jax.ShapeDtypeStruct((L, B_pad, H), jnp.float32),
        jax.ShapeDtypeStruct((T, B_pad, S), jnp.float32),
    )

    pred, h_new, c_new, attn = pl.pallas_call(
        _make_decoder_kernel(L, H, D, P),
        grid=(T,),
        in_specs=in_specs,
        out_specs=out_specs,
        out_shape=out_shape,
        scratch_shapes=[
            pltpu.VMEM((L, B_pad, H), jnp.float32),   # resident hidden state
            pltpu.VMEM((L, B_pad, H), jnp.float32),   # resident cell state
            pltpu.VMEM((B_pad, S, H), jnp.float32),   # hoisted enc @ W_e + attn_b
        ],
        # hidden -> new hidden, cell -> new cell (inputs consumed at t==0 only,
        # outputs written back once at grid end — safe with the aliasing).
        input_output_aliases={1: 1, 2: 2},
        compiler_params=pltpu.CompilerParams(dimension_semantics=("arbitrary",)),
    )(xs_p, h_p, c_p, enc_p,
      packed["lstm_wx"], packed["lstm_wh"], packed["lstm_b"],
      packed["head_w"], packed["head_vec"],
      packed["fc2_w"], packed["fc2_b"], packed["fc3_w"], packed["fc3_b"])

    return (pred[:, :B, :], h_new[:, :B, :], c_new[:, :B, :], attn[:, :B, :])


def decoder_forward(x, hidden, cell, encoder_outputs, packed,
                    *, num_layers, hidden_dim, output_dim):
    """Exactly the PyTorch module forward (one decode step)."""
    pred, h_new, c_new, attn = decoder_decode(
        x[None], hidden, cell, encoder_outputs, packed,
        num_layers=num_layers, hidden_dim=hidden_dim, output_dim=output_dim)
    # attn_weights are returned with the unsqueezed dim, as in the PyTorch module
    return pred[0], h_new, c_new, attn[0][:, None, :]


# ----------------------------- pure-JAX reference ----------------------------


def decoder_reference(x, hidden, cell, enc, params, *, num_layers, hidden_dim):
    H, L = hidden_dim, num_layers
    last_h = hidden[-1]
    cat = jnp.concatenate(
        [jnp.broadcast_to(last_h[:, None, :], enc.shape), enc], axis=-1)
    energy = jnp.tanh(cat @ params["attn_w"] + params["attn_b"])
    scores = (energy @ params["attn_v"])[..., 0]
    attn = jax.nn.softmax(scores, axis=-1)
    weighted = jnp.einsum('bs,bsh->bh', attn, enc)

    layer_in = x
    h_out, c_out = [], []
    for l in range(L):
        gates = (layer_in @ params[f"w_ih_{l}"] + hidden[l] @ params[f"w_hh_{l}"]
                 + params[f"b_ih_{l}"] + params[f"b_hh_{l}"])
        i_g = jax.nn.sigmoid(gates[:, 0 * H:1 * H])
        f_g = jax.nn.sigmoid(gates[:, 1 * H:2 * H])
        g_g = jnp.tanh(gates[:, 2 * H:3 * H])
        o_g = jax.nn.sigmoid(gates[:, 3 * H:4 * H])
        c_new = f_g * cell[l] + i_g * g_g
        h_new = o_g * jnp.tanh(c_new)
        h_out.append(h_new)
        c_out.append(c_new)
        layer_in = h_new

    concat = jnp.concatenate([layer_in, weighted], axis=1)
    fc1 = jax.nn.relu(concat @ params["fc1_w"] + params["fc1_b"])
    fc2 = jax.nn.relu(fc1 @ params["fc2_w"] + params["fc2_b"])
    pred = fc2 @ params["fc3_w"] + params["fc3_b"]
    return pred, jnp.stack(h_out), jnp.stack(c_out), attn[:, None, :]


def decoder_reference_steps(xs, hidden, cell, enc, params, *, num_layers, hidden_dim):
    preds, attns = [], []
    h, c = hidden, cell
    for t in range(xs.shape[0]):
        p, h, c, a = decoder_reference(xs[t], h, c, enc, params,
                                       num_layers=num_layers, hidden_dim=hidden_dim)
        preds.append(p)
        attns.append(a)
    return jnp.stack(preds), h, c, jnp.stack(attns)


# ----------------------------- main -------------------------------------------


if __name__ == "__main__":
    # small, module-consistent shapes
    B, S = 2, 8          # batch, encoder sequence length
    D = 8                # output_dim
    H = 32               # hidden_dim
    L = 2                # num_layers
    T = 4                # decode steps for the in-kernel-loop check

    key = jax.random.PRNGKey(0)
    ks = iter(jax.random.split(key, 64))

    def rnd(shape, scale=0.1):
        return (scale * jax.random.normal(next(ks), shape)).astype(jnp.float32)

    # deterministic synthetic parameters (shapes from the module __init__)
    params = {
        "attn_w": rnd((2 * H, H)), "attn_b": rnd((1, H)), "attn_v": rnd((H, 1)),
        "fc1_w": rnd((2 * H, H)), "fc1_b": rnd((1, H)),
        "fc2_w": rnd((H, H // 2)), "fc2_b": rnd((1, H // 2)),
        "fc3_w": rnd((H // 2, D)), "fc3_b": rnd((1, D)),
    }
    for l in range(L):
        in_size = D if l == 0 else H
        params[f"w_ih_{l}"] = rnd((in_size, 4 * H))   # transposed vs. PyTorch (4H, in)
        params[f"w_hh_{l}"] = rnd((H, 4 * H))
        params[f"b_ih_{l}"] = rnd((1, 4 * H))
        params[f"b_hh_{l}"] = rnd((1, 4 * H))

    x = rnd((B, D), scale=1.0)
    xs = rnd((T, B, D), scale=1.0)
    hidden = rnd((L, B, H), scale=1.0)
    cell = rnd((L, B, H), scale=1.0)
    encoder_outputs = rnd((B, S, H), scale=1.0)

    packed = pack_decoder_params(params, num_layers=L, hidden_dim=H, output_dim=D)

    # ---- single step: exactly the module forward ----
    pred_r, h_r, c_r, attn_r = decoder_reference(
        x, hidden, cell, encoder_outputs, params, num_layers=L, hidden_dim=H)
    pred, h_new, c_new, attn_w = decoder_forward(
        x, hidden, cell, encoder_outputs, packed,
        num_layers=L, hidden_dim=H, output_dim=D)
    jax.block_until_ready((pred, h_new, c_new, attn_w))

    assert jnp.allclose(h_new, h_r, atol=1e-5, rtol=1e-5)
    assert jnp.allclose(c_new, c_r, atol=1e-5, rtol=1e-5)
    assert jnp.allclose(attn_w, attn_r, atol=1e-4, rtol=1e-4)
    assert jnp.allclose(pred, pred_r, atol=1e-4, rtol=1e-4)

    # ---- T teacher-forced steps in ONE pallas_call (launch/DMA cost amortized) ----
    preds_r, hT_r, cT_r, attns_r = decoder_reference_steps(
        xs, hidden, cell, encoder_outputs, params, num_layers=L, hidden_dim=H)
    preds, hT, cT, attns = decoder_decode(
        xs, hidden, cell, encoder_outputs, packed,
        num_layers=L, hidden_dim=H, output_dim=D)
    jax.block_until_ready((preds, hT, cT, attns))

    assert jnp.allclose(hT, hT_r, atol=1e-5, rtol=1e-5)
    assert jnp.allclose(cT, cT_r, atol=1e-5, rtol=1e-5)
    assert jnp.allclose(attns, attns_r[:, :, 0, :], atol=1e-4, rtol=1e-4)
    assert jnp.allclose(preds, preds_r, atol=1e-4, rtol=1e-4)

    print("KERNEL_OK")
</pallas_src>

<mosaic_0001>
module attributes {stable_mosaic.version = 11 : i64} {
  func.func @kernel(%arg0: i32, %arg1: memref<1x8x32xf32, #tpu.memory_space<vmem>>, %arg2: memref<2x8x32xf32, #tpu.memory_space<vmem>>, %arg3: memref<2x8x32xf32, #tpu.memory_space<vmem>>, %arg4: memref<8x8x32xf32, #tpu.memory_space<vmem>>, %arg5: memref<2x32x128xf32, #tpu.memory_space<vmem>>, %arg6: memref<2x32x128xf32, #tpu.memory_space<vmem>>, %arg7: memref<2x1x128xf32, #tpu.memory_space<vmem>>, %arg8: memref<128x32xf32, #tpu.memory_space<vmem>>, %arg9: memref<3x32xf32, #tpu.memory_space<vmem>>, %arg10: memref<32x16xf32, #tpu.memory_space<vmem>>, %arg11: memref<1x16xf32, #tpu.memory_space<vmem>>, %arg12: memref<16x8xf32, #tpu.memory_space<vmem>>, %arg13: memref<1x8xf32, #tpu.memory_space<vmem>>, %arg14: memref<1x8x8xf32, #tpu.memory_space<vmem>>, %arg15: memref<2x8x32xf32, #tpu.memory_space<vmem>>, %arg16: memref<2x8x32xf32, #tpu.memory_space<vmem>>, %arg17: memref<1x8x8xf32, #tpu.memory_space<vmem>>, %arg18: memref<2x8x32xf32, #tpu.memory_space<vmem>>, %arg19: memref<2x8x32xf32, #tpu.memory_space<vmem>>, %arg20: memref<8x8x32xf32, #tpu.memory_space<vmem>>) attributes {dimension_semantics = [#tpu.dimension_semantics<arbitrary>], iteration_bounds = array<i64: 1>, scalar_prefetch = 0 : i64, scratch_operands = 3 : i64, tpu.core_type = #tpu.core_type<tc>, window_params = [{transform_indices = @transform_0, window_bounds = array<i64: 1, 8, 32>}, {pipeline_mode = #tpu.pipeline_mode<synchronous>, transform_indices = @transform_1, window_bounds = array<i64: 2, 8, 32>}, {pipeline_mode = #tpu.pipeline_mode<synchronous>, transform_indices = @transform_2, window_bounds = array<i64: 2, 8, 32>}, {pipeline_mode = #tpu.pipeline_mode<synchronous>, transform_indices = @transform_3, window_bounds = array<i64: 8, 8, 32>}, {pipeline_mode = #tpu.pipeline_mode<synchronous>, transform_indices = @transform_4, window_bounds = array<i64: 2, 32, 128>}, {pipeline_mode = #tpu.pipeline_mode<synchronous>, transform_indices = @transform_5, window_bounds = array<i64: 2, 32, 128>}, {pipeline_mode = #tpu.pipeline_mode<synchronous>, transform_indices = @transform_6, window_bounds = array<i64: 2, 1, 128>}, {pipeline_mode = #tpu.pipeline_mode<synchronous>, transform_indices = @transform_7, window_bounds = array<i64: 128, 32>}, {pipeline_mode = #tpu.pipeline_mode<synchronous>, transform_indices = @transform_8, window_bounds = array<i64: 3, 32>}, {pipeline_mode = #tpu.pipeline_mode<synchronous>, transform_indices = @transform_9, window_bounds = array<i64: 32, 16>}, {pipeline_mode = #tpu.pipeline_mode<synchronous>, transform_indices = @transform_10, window_bounds = array<i64: 1, 16>}, {pipeline_mode = #tpu.pipeline_mode<synchronous>, transform_indices = @transform_11, window_bounds = array<i64: 16, 8>}, {pipeline_mode = #tpu.pipeline_mode<synchronous>, transform_indices = @transform_12, window_bounds = array<i64: 1, 8>}, {transform_indices = @transform_13, window_bounds = array<i64: 1, 8, 8>}, {pipeline_mode = #tpu.pipeline_mode<synchronous>, transform_indices = @transform_14, window_bounds = array<i64: 2, 8, 32>}, {pipeline_mode = #tpu.pipeline_mode<synchronous>, transform_indices = @transform_15, window_bounds = array<i64: 2, 8, 32>}, {transform_indices = @transform_16, window_bounds = array<i64: 1, 8, 8>}]} {
    %c0 = arith.constant 0 : index
    %c0_0 = arith.constant 0 : index
    %0 = vector.load %arg9[%c0, %c0_0] : memref<3x32xf32, #tpu.memory_space<vmem>>, vector<3x32xf32>
    %1 = vector.extract_strided_slice %0 {offsets = [0, 0], sizes = [1, 32], strides = [1, 1]} : vector<3x32xf32> to vector<1x32xf32>
    %2 = vector.extract_strided_slice %0 {offsets = [1, 0], sizes = [1, 32], strides = [1, 1]} : vector<3x32xf32> to vector<1x32xf32>
    %3 = vector.extract_strided_slice %0 {offsets = [2, 0], sizes = [1, 32], strides = [1, 1]} : vector<3x32xf32> to vector<1x32xf32>
    %c0_i32 = arith.constant 0 : i32
    %4 = arith.cmpi eq, %arg0, %c0_i32 : i32
    %5 = arith.extui %4 : i1 to i32
    %c0_i32_1 = arith.constant 0 : i32
    %6 = arith.cmpi ne, %5, %c0_i32_1 : i32
    scf.if %6 {
      %c0_83 = arith.constant 0 : index
      %c0_84 = arith.constant 0 : index
      %c0_85 = arith.constant 0 : index
      %148 = vector.load %arg2[%c0_83, %c0_84, %c0_85] : memref<2x8x32xf32, #tpu.memory_space<vmem>>, vector<2x8x32xf32>
      %c0_86 = arith.constant 0 : index
      %c0_87 = arith.constant 0 : index
      %c0_88 = arith.constant 0 : index
      %149 = vector.load %arg18[%c0_86, %c0_87, %c0_88] : memref<2x8x32xf32, #tpu.memory_space<vmem>>, vector<2x8x32xf32>
      tpu.vector_store %arg18[%c0_86, %c0_87, %c0_88], %148 {strides = array<i32>} : memref<2x8x32xf32, #tpu.memory_space<vmem>>, vector<2x8x32xf32>,
      %c0_89 = arith.constant 0 : index
      %c0_90 = arith.constant 0 : index
      %c0_91 = arith.constant 0 : index
      %150 = vector.load %arg3[%c0_89, %c0_90, %c0_91] : memref<2x8x32xf32, #tpu.memory_space<vmem>>, vector<2x8x32xf32>
      %c0_92 = arith.constant 0 : index
      %c0_93 = arith.constant 0 : index
      %c0_94 = arith.constant 0 : index
      %151 = vector.load %arg19[%c0_92, %c0_93, %c0_94] : memref<2x8x32xf32, #tpu.memory_space<vmem>>, vector<2x8x32xf32>
      tpu.vector_store %arg19[%c0_92, %c0_93, %c0_94], %150 {strides = array<i32>} : memref<2x8x32xf32, #tpu.memory_space<vmem>>, vector<2x8x32xf32>,
      %c32 = arith.constant 32 : index
      %c0_95 = arith.constant 0 : index
      %152 = vector.load %arg8[%c32, %c0_95] : memref<128x32xf32, #tpu.memory_space<vmem>>, vector<32x32xf32>
      %c0_96 = arith.constant 0 : index
      %c0_97 = arith.constant 0 : index
      %c0_98 = arith.constant 0 : index
      %153 = vector.load %arg4[%c0_96, %c0_97, %c0_98] : memref<8x8x32xf32, #tpu.memory_space<vmem>>, vector<8x8x32xf32>
      %154 = vector.shape_cast %153 : vector<8x8x32xf32> to vector<64x32xf32>
      %cst_99 = arith.constant dense<0.000000e+00> : vector<64x32xf32>
      %155 = tpu.matmul %154, %152, %cst_99 {dimension_numbers = #tpu.dot_dimension_numbers<[1], [0], [0], [1], [0, 0, 1, 1], [], []>} : vector<64x32xf32>, vector<32x32xf32>, vector<64x32xf32> -> vector<64x32xf32>
      %156 = vector.broadcast %1 : vector<1x32xf32> to vector<64x32xf32>
      %157 = arith.addf %155, %156 : vector<64x32xf32>
      %158 = vector.shape_cast %157 : vector<64x32xf32> to vector<8x8x32xf32>
      %c0_100 = arith.constant 0 : index
      %c0_101 = arith.constant 0 : index
      %c0_102 = arith.constant 0 : index
      %159 = vector.load %arg20[%c0_100, %c0_101, %c0_102] : memref<8x8x32xf32, #tpu.memory_space<vmem>>, vector<8x8x32xf32>
      tpu.vector_store %arg20[%c0_100, %c0_101, %c0_102], %158 {strides = array<i32>} : memref<8x8x32xf32, #tpu.memory_space<vmem>>, vector<8x8x32xf32>,
    } else {
    }
    %c0_2 = arith.constant 0 : index
    %c0_3 = arith.constant 0 : index
    %c0_4 = arith.constant 0 : index
    %7 = vector.load %arg18[%c0_2, %c0_3, %c0_4] : memref<2x8x32xf32, #tpu.memory_space<vmem>>, vector<2x8x32xf32>
    %c0_5 = arith.constant 0 : index
    %c0_6 = arith.constant 0 : index
    %c0_7 = arith.constant 0 : index
    %8 = vector.load %arg19[%c0_5, %c0_6, %c0_7] : memref<2x8x32xf32, #tpu.memory_space<vmem>>, vector<2x8x32xf32>
    %c0_8 = arith.constant 0 : index
    %c0_9 = arith.constant 0 : index
    %c0_10 = arith.constant 0 : index
    %9 = vector.load %arg1[%c0_8, %c0_9, %c0_10] : memref<1x8x32xf32, #tpu.memory_space<vmem>>, vector<1x8x32xf32>
    %10 = vector.shape_cast %9 : vector<1x8x32xf32> to vector<8x32xf32>
    %c0_11 = arith.constant 0 : index
    %c0_12 = arith.constant 0 : index
    %11 = vector.load %arg8[%c0_11, %c0_12] : memref<128x32xf32, #tpu.memory_space<vmem>>, vector<32x32xf32>
    %12 = vector.extract_strided_slice %7 {offsets = [1, 0, 0], sizes = [1, 8, 32], strides = [1, 1, 1]} : vector<2x8x32xf32> to vector<1x8x32xf32>
    %13 = vector.shape_cast %12 : vector<1x8x32xf32> to vector<8x32xf32>
    %cst = arith.constant dense<0.000000e+00> : vector<8x32xf32>
    %14 = tpu.matmul %13, %11, %cst {dimension_numbers = #tpu.dot_dimension_numbers<[1], [0], [0], [1], [0, 0, 1, 1], [], []>} : vector<8x32xf32>, vector<32x32xf32>, vector<8x32xf32> -> vector<8x32xf32>
    %c0_13 = arith.constant 0 : index
    %c0_14 = arith.constant 0 : index
    %c0_15 = arith.constant 0 : index
    %15 = vector.load %arg20[%c0_13, %c0_14, %c0_15] : memref<8x8x32xf32, #tpu.memory_space<vmem>>, vector<8x8x32xf32>
    %16 = vector.shape_cast %14 : vector<8x32xf32> to vector<8x1x32xf32>
    %17 = vector.broadcast %16 : vector<8x1x32xf32> to vector<8x8x32xf32>
    %18 = arith.addf %15, %17 : vector<8x8x32xf32>
    %19 = math.tanh %18 : vector<8x8x32xf32>
    %20 = vector.shape_cast %2 : vector<1x32xf32> to vector<1x1x32xf32>
    %21 = vector.broadcast %20 : vector<1x1x32xf32> to vector<8x8x32xf32>
    %22 = arith.mulf %19, %21 : vector<8x8x32xf32>
    %cst_16 = arith.constant dense<0.000000e+00> : vector<8x8xf32>
    %23 = vector.multi_reduction <add>, %22, %cst_16 [2] : vector<8x8x32xf32> to vector<8x8xf32>
    %cst_17 = arith.constant dense<0xFF800000> : vector<8xf32>
    %24 = vector.multi_reduction <maximumf>, %23, %cst_17 [1] : vector<8x8xf32> to vector<8xf32>
    %25 = vector.shape_cast %24 : vector<8xf32> to vector<8x1xf32>
    %26 = vector.broadcast %25 : vector<8x1xf32> to vector<8x8xf32>
    %27 = arith.subf %23, %26 : vector<8x8xf32>
    %28 = math.exp %27 : vector<8x8xf32>
    %cst_18 = arith.constant dense<0.000000e+00> : vector<8xf32>
    %29 = vector.multi_reduction <add>, %28, %cst_18 [1] : vector<8x8xf32> to vector<8xf32>
    %30 = vector.shape_cast %29 : vector<8xf32> to vector<8x1xf32>
    %31 = vector.broadcast %30 : vector<8x1xf32> to vector<8x8xf32>
    %32 = arith.divf %28, %31 : vector<8x8xf32>
    %c0_19 = arith.constant 0 : index
    %c0_20 = arith.constant 0 : index
    %c0_21 = arith.constant 0 : index
    %33 = vector.load %arg17[%c0_19, %c0_20, %c0_21] : memref<1x8x8xf32, #tpu.memory_space<vmem>>, vector<1x8x8xf32>
    %34 = vector.shape_cast %33 : vector<1x8x8xf32> to vector<8x8xf32>
    %35 = vector.shape_cast %32 : vector<8x8xf32> to vector<1x8x8xf32>
    tpu.vector_store %arg17[%c0_19, %c0_20, %c0_21], %35 {strides = array<i32>} : memref<1x8x8xf32, #tpu.memory_space<vmem>>, vector<1x8x8xf32>,
    %36 = vector.shape_cast %32 : vector<8x8xf32> to vector<8x8x1xf32>
    %c0_22 = arith.constant 0 : index
    %c0_23 = arith.constant 0 : index
    %c0_24 = arith.constant 0 : index
    %37 = vector.load %arg4[%c0_22, %c0_23, %c0_24] : memref<8x8x32xf32, #tpu.memory_space<vmem>>, vector<8x8x32xf32>
    %38 = vector.broadcast %36 : vector<8x8x1xf32> to vector<8x8x32xf32>
    %39 = arith.mulf %38, %37 : vector<8x8x32xf32>
    %cst_25 = arith.constant dense<0.000000e+00> : vector<8x32xf32>
    %40 = vector.multi_reduction <add>, %39, %cst_25 [1] : vector<8x8x32xf32> to vector<8x32xf32>
    %41 = vector.extract_strided_slice %7 {offsets = [0, 0, 0], sizes = [1, 8, 32], strides = [1, 1, 1]} : vector<2x8x32xf32> to vector<1x8x32xf32>
    %42 = vector.shape_cast %41 : vector<1x8x32xf32> to vector<8x32xf32>
    %43 = vector.extract_strided_slice %8 {offsets = [0, 0, 0], sizes = [1, 8, 32], strides = [1, 1, 1]} : vector<2x8x32xf32> to vector<1x8x32xf32>
    %44 = vector.shape_cast %43 : vector<1x8x32xf32> to vector<8x32xf32>
    %c0_26 = arith.constant 0 : index
    %c0_27 = arith.constant 0 : index
    %c0_28 = arith.constant 0 : index
    %45 = vector.load %arg5[%c0_26, %c0_27, %c0_28] : memref<2x32x128xf32, #tpu.memory_space<vmem>>, vector<1x32x128xf32>
    %46 = vector.shape_cast %45 : vector<1x32x128xf32> to vector<32x128xf32>
    %cst_29 = arith.constant dense<0.000000e+00> : vector<8x128xf32>
    %47 = tpu.matmul %10, %46, %cst_29 {dimension_numbers = #tpu.dot_dimension_numbers<[1], [0], [0], [1], [0, 0, 1, 1], [], []>} : vector<8x32xf32>, vector<32x128xf32>, vector<8x128xf32> -> vector<8x128xf32>
    %c0_30 = arith.constant 0 : index
    %c0_31 = arith.constant 0 : index
    %c0_32 = arith.constant 0 : index
    %48 = vector.load %arg6[%c0_30, %c0_31, %c0_32] : memref<2x32x128xf32, #tpu.memory_space<vmem>>, vector<1x32x128xf32>
    %49 = vector.shape_cast %48 : vector<1x32x128xf32> to vector<32x128xf32>
    %cst_33 = arith.constant dense<0.000000e+00> : vector<8x128xf32>
    %50 = tpu.matmul %42, %49, %cst_33 {dimension_numbers = #tpu.dot_dimension_numbers<[1], [0], [0], [1], [0, 0, 1, 1], [], []>} : vector<8x32xf32>, vector<32x128xf32>, vector<8x128xf32> -> vector<8x128xf32>
    %51 = arith.addf %47, %50 : vector<8x128xf32>
    %c0_34 = arith.constant 0 : index
    %c0_35 = arith.constant 0 : index
    %c0_36 = arith.constant 0 : index
    %52 = vector.load %arg7[%c0_34, %c0_35, %c0_36] : memref<2x1x128xf32, #tpu.memory_space<vmem>>, vector<1x1x128xf32>
    %53 = vector.shape_cast %52 : vector<1x1x128xf32> to vector<1x128xf32>
    %54 = vector.broadcast %53 : vector<1x128xf32> to vector<8x128xf32>
    %55 = arith.addf %51, %54 : vector<8x128xf32>
    %56 = arith.negf %55 : vector<8x128xf32>
    %57 = math.exp %56 : vector<8x128xf32>
    %cst_37 = arith.constant 1.000000e+00 : f32
    %58 = vector.broadcast %cst_37 : f32 to vector<8x128xf32>
    %59 = arith.addf %58, %57 : vector<8x128xf32>
    %60 = arith.divf %58, %59 : vector<8x128xf32>
    %61 = math.tanh %55 : vector<8x128xf32>
    %62 = tpu.iota {dimensions = array<i32: 1>} : vector<8x128xi32>
    %c96_i32 = arith.constant 96 : i32
    %63 = vector.broadcast %c96_i32 : i32 to vector<8x128xi32>
    %64 = arith.cmpi slt, %62, %63 : vector<8x128xi32>
    %65 = arith.select %64, %60, %61 : vector<8x128xi1>, vector<8x128xf32>
    %66 = vector.extract_strided_slice %65 {offsets = [0, 0], sizes = [8, 32], strides = [1, 1]} : vector<8x128xf32> to vector<8x32xf32>
    %67 = vector.extract_strided_slice %65 {offsets = [0, 32], sizes = [8, 32], strides = [1, 1]} : vector<8x128xf32> to vector<8x32xf32>
    %68 = vector.extract_strided_slice %65 {offsets = [0, 64], sizes = [8, 32], strides = [1, 1]} : vector<8x128xf32> to vector<8x32xf32>
    %69 = vector.extract_strided_slice %65 {offsets = [0, 96], sizes = [8, 32], strides = [1, 1]} : vector<8x128xf32> to vector<8x32xf32>
    %70 = arith.mulf %67, %44 : vector<8x32xf32>
    %71 = arith.mulf %66, %69 : vector<8x32xf32>
    %72 = arith.addf %70, %71 : vector<8x32xf32>
    %73 = math.tanh %72 : vector<8x32xf32>
    %74 = arith.mulf %68, %73 : vector<8x32xf32>
    %c0_38 = arith.constant 0 : index
    %c0_39 = arith.constant 0 : index
    %c0_40 = arith.constant 0 : index
    %75 = vector.load %arg18[%c0_38, %c0_39, %c0_40] : memref<2x8x32xf32, #tpu.memory_space<vmem>>, vector<1x8x32xf32>
    %76 = vector.shape_cast %75 : vector<1x8x32xf32> to vector<8x32xf32>
    %77 = vector.shape_cast %74 : vector<8x32xf32> to vector<1x8x32xf32>
    tpu.vector_store %arg18[%c0_38, %c0_39, %c0_40], %77 {strides = array<i32>} : memref<2x8x32xf32, #tpu.memory_space<vmem>>, vector<1x8x32xf32>,
    %c0_41 = arith.constant 0 : index
    %c0_42 = arith.constant 0 : index
    %c0_43 = arith.constant 0 : index
    %78 = vector.load %arg19[%c0_41, %c0_42, %c0_43] : memref<2x8x32xf32, #tpu.memory_space<vmem>>, vector<1x8x32xf32>
    %79 = vector.shape_cast %78 : vector<1x8x32xf32> to vector<8x32xf32>
    %80 = vector.shape_cast %72 : vector<8x32xf32> to vector<1x8x32xf32>
    tpu.vector_store %arg19[%c0_41, %c0_42, %c0_43], %80 {strides = array<i32>} : memref<2x8x32xf32, #tpu.memory_space<vmem>>, vector<1x8x32xf32>,
    %81 = vector.extract_strided_slice %7 {offsets = [1, 0, 0], sizes = [1, 8, 32], strides = [1, 1, 1]} : vector<2x8x32xf32> to vector<1x8x32xf32>
    %82 = vector.shape_cast %81 : vector<1x8x32xf32> to vector<8x32xf32>
    %83 = vector.extract_strided_slice %8 {offsets = [1, 0, 0], sizes = [1, 8, 32], strides = [1, 1, 1]} : vector<2x8x32xf32> to vector<1x8x32xf32>
    %84 = vector.shape_cast %83 : vector<1x8x32xf32> to vector<8x32xf32>
    %c1 = arith.constant 1 : index
    %c0_44 = arith.constant 0 : index
    %c0_45 = arith.constant 0 : index
    %85 = vector.load %arg5[%c1, %c0_44, %c0_45] : memref<2x32x128xf32, #tpu.memory_space<vmem>>, vector<1x32x128xf32>
    %86 = vector.shape_cast %85 : vector<1x32x128xf32> to vector<32x128xf32>
    %cst_46 = arith.constant dense<0.000000e+00> : vector<8x128xf32>
    %87 = tpu.matmul %74, %86, %cst_46 {dimension_numbers = #tpu.dot_dimension_numbers<[1], [0], [0], [1], [0, 0, 1, 1], [], []>} : vector<8x32xf32>, vector<32x128xf32>, vector<8x128xf32> -> vector<8x128xf32>
    %c1_47 = arith.constant 1 : index
    %c0_48 = arith.constant 0 : index
    %c0_49 = arith.constant 0 : index
    %88 = vector.load %arg6[%c1_47, %c0_48, %c0_49] : memref<2x32x128xf32, #tpu.memory_space<vmem>>, vector<1x32x128xf32>
    %89 = vector.shape_cast %88 : vector<1x32x128xf32> to vector<32x128xf32>
    %cst_50 = arith.constant dense<0.000000e+00> : vector<8x128xf32>
    %90 = tpu.matmul %82, %89, %cst_50 {dimension_numbers = #tpu.dot_dimension_numbers<[1], [0], [0], [1], [0, 0, 1, 1], [], []>} : vector<8x32xf32>, vector<32x128xf32>, vector<8x128xf32> -> vector<8x128xf32>
    %91 = arith.addf %87, %90 : vector<8x128xf32>
    %c1_51 = arith.constant 1 : index
    %c0_52 = arith.constant 0 : index
    %c0_53 = arith.constant 0 : index
    %92 = vector.load %arg7[%c1_51, %c0_52, %c0_53] : memref<2x1x128xf32, #tpu.memory_space<vmem>>, vector<1x1x128xf32>
    %93 = vector.shape_cast %92 : vector<1x1x128xf32> to vector<1x128xf32>
    %94 = vector.broadcast %93 : vector<1x128xf32> to vector<8x128xf32>
    %95 = arith.addf %91, %94 : vector<8x128xf32>
    %96 = arith.negf %95 : vector<8x128xf32>
    %97 = math.exp %96 : vector<8x128xf32>
    %cst_54 = arith.constant 1.000000e+00 : f32
    %98 = vector.broadcast %cst_54 : f32 to vector<8x128xf32>
    %99 = arith.addf %98, %97 : vector<8x128xf32>
    %100 = arith.divf %98, %99 : vector<8x128xf32>
    %101 = math.tanh %95 : vector<8x128xf32>
    %102 = tpu.iota {dimensions = array<i32: 1>} : vector<8x128xi32>
    %c96_i32_55 = arith.constant 96 : i32
    %103 = vector.broadcast %c96_i32_55 : i32 to vector<8x128xi32>
    %104 = arith.cmpi slt, %102, %103 : vector<8x128xi32>
    %105 = arith.select %104, %100, %101 : vector<8x128xi1>, vector<8x128xf32>
    %106 = vector.extract_strided_slice %105 {offsets = [0, 0], sizes = [8, 32], strides = [1, 1]} : vector<8x128xf32> to vector<8x32xf32>
    %107 = vector.extract_strided_slice %105 {offsets = [0, 32], sizes = [8, 32], strides = [1, 1]} : vector<8x128xf32> to vector<8x32xf32>
    %108 = vector.extract_strided_slice %105 {offsets = [0, 64], sizes = [8, 32], strides = [1, 1]} : vector<8x128xf32> to vector<8x32xf32>
    %109 = vector.extract_strided_slice %105 {offsets = [0, 96], sizes = [8, 32], strides = [1, 1]} : vector<8x128xf32> to vector<8x32xf32>
    %110 = arith.mulf %107, %84 : vector<8x32xf32>
    %111 = arith.mulf %106, %109 : vector<8x32xf32>
    %112 = arith.addf %110, %111 : vector<8x32xf32>
    %113 = math.tanh %112 : vector<8x32xf32>
    %114 = arith.mulf %108, %113 : vector<8x32xf32>
    %c1_56 = arith.constant 1 : index
    %c0_57 = arith.constant 0 : index
    %c0_58 = arith.constant 0 : index
    %115 = vector.load %arg18[%c1_56, %c0_57, %c0_58] : memref<2x8x32xf32, #tpu.memory_space<vmem>>, vector<1x8x32xf32>
    %116 = vector.shape_cast %115 : vector<1x8x32xf32> to vector<8x32xf32>
    %117 = vector.shape_cast %114 : vector<8x32xf32> to vector<1x8x32xf32>
    tpu.vector_store %arg18[%c1_56, %c0_57, %c0_58], %117 {strides = array<i32>} : memref<2x8x32xf32, #tpu.memory_space<vmem>>, vector<1x8x32xf32>,
    %c1_59 = arith.constant 1 : index
    %c0_60 = arith.constant 0 : index
    %c0_61 = arith.constant 0 : index
    %118 = vector.load %arg19[%c1_59, %c0_60, %c0_61] : memref<2x8x32xf32, #tpu.memory_space<vmem>>, vector<1x8x32xf32>
    %119 = vector.shape_cast %118 : vector<1x8x32xf32> to vector<8x32xf32>
    %120 = vector.shape_cast %112 : vector<8x32xf32> to vector<1x8x32xf32>
    tpu.vector_store %arg19[%c1_59, %c0_60, %c0_61], %120 {strides = array<i32>} : memref<2x8x32xf32, #tpu.memory_space<vmem>>, vector<1x8x32xf32>,
    %c64 = arith.constant 64 : index
    %c0_62 = arith.constant 0 : index
    %121 = vector.load %arg8[%c64, %c0_62] : memref<128x32xf32, #tpu.memory_space<vmem>>, vector<32x32xf32>
    %c96 = arith.constant 96 : index
    %c0_63 = arith.constant 0 : index
    %122 = vector.load %arg8[%c96, %c0_63] : memref<128x32xf32, #tpu.memory_space<vmem>>, vector<32x32xf32>
    %cst_64 = arith.constant dense<0.000000e+00> : vector<8x32xf32>
    %123 = tpu.matmul %114, %121, %cst_64 {dimension_numbers = #tpu.dot_dimension_numbers<[1], [0], [0], [1], [0, 0, 1, 1], [], []>} : vector<8x32xf32>, vector<32x32xf32>, vector<8x32xf32> -> vector<8x32xf32>
    %cst_65 = arith.constant dense<0.000000e+00> : vector<8x32xf32>
    %124 = tpu.matmul %40, %122, %cst_65 {dimension_numbers = #tpu.dot_dimension_numbers<[1], [0], [0], [1], [0, 0, 1, 1], [], []>} : vector<8x32xf32>, vector<32x32xf32>, vector<8x32xf32> -> vector<8x32xf32>
    %125 = arith.addf %123, %124 : vector<8x32xf32>
    %126 = vector.broadcast %3 : vector<1x32xf32> to vector<8x32xf32>
    %127 = arith.addf %125, %126 : vector<8x32xf32>
    %cst_66 = arith.constant 0.000000e+00 : f32
    %128 = vector.broadcast %cst_66 : f32 to vector<8x32xf32>
    %129 = arith.maximumf %127, %128 : vector<8x32xf32>
    %c0_67 = arith.constant 0 : index
    %c0_68 = arith.constant 0 : index
    %130 = vector.load %arg10[%c0_67, %c0_68] : memref<32x16xf32, #tpu.memory_space<vmem>>, vector<32x16xf32>
    %cst_69 = arith.constant dense<0.000000e+00> : vector<8x16xf32>
    %131 = tpu.matmul %129, %130, %cst_69 {dimension_numbers = #tpu.dot_dimension_numbers<[1], [0], [0], [1], [0, 0, 1, 1], [], []>} : vector<8x32xf32>, vector<32x16xf32>, vector<8x16xf32> -> vector<8x16xf32>
    %c0_70 = arith.constant 0 : index
    %c0_71 = arith.constant 0 : index
    %132 = vector.load %arg11[%c0_70, %c0_71] : memref<1x16xf32, #tpu.memory_space<vmem>>, vector<1x16xf32>
    %133 = vector.broadcast %132 : vector<1x16xf32> to vector<8x16xf32>
    %134 = arith.addf %131, %133 : vector<8x16xf32>
    %cst_72 = arith.constant 0.000000e+00 : f32
    %135 = vector.broadcast %cst_72 : f32 to vector<8x16xf32>
    %136 = arith.maximumf %134, %135 : vector<8x16xf32>
    %c0_73 = arith.constant 0 : index
    %c0_74 = arith.constant 0 : index
    %137 = vector.load %arg12[%c0_73, %c0_74] : memref<16x8xf32, #tpu.memory_space<vmem>>, vector<16x8xf32>
    %cst_75 = arith.constant dense<0.000000e+00> : vector<8x8xf32>
    %138 = tpu.matmul %136, %137, %cst_75 {dimension_numbers = #tpu.dot_dimension_numbers<[1], [0], [0], [1], [0, 0, 1, 1], [], []>} : vector<8x16xf32>, vector<16x8xf32>, vector<8x8xf32> -> vector<8x8xf32>
    %c0_76 = arith.constant 0 : index
    %c0_77 = arith.constant 0 : index
    %139 = vector.load %arg13[%c0_76, %c0_77] : memref<1x8xf32, #tpu.memory_space<vmem>>, vector<1x8xf32>
    %140 = vector.broadcast %139 : vector<1x8xf32> to vector<8x8xf32>
    %141 = arith.addf %138, %140 : vector<8x8xf32>
    %c0_78 = arith.constant 0 : index
    %c0_79 = arith.constant 0 : index
    %c0_80 = arith.constant 0 : index
    %142 = vector.load %arg14[%c0_78, %c0_79, %c0_80] : memref<1x8x8xf32, #tpu.memory_space<vmem>>, vector<1x8x8xf32>
    %143 = vector.shape_cast %142 : vector<1x8x8xf32> to vector<8x8xf32>
    %144 = vector.shape_cast %141 : vector<8x8xf32> to vector<1x8x8xf32>
    tpu.vector_store %arg14[%c0_78, %c0_79, %c0_80], %144 {strides = array<i32>} : memref<1x8x8xf32, #tpu.memory_space<vmem>>, vector<1x8x8xf32>,
    %c0_i32_81 = arith.constant 0 : i32
    %145 = arith.cmpi eq, %arg0, %c0_i32_81 : i32
    %146 = arith.extui %145 : i1 to i32
    %c0_i32_82 = arith.constant 0 : i32
    %147 = arith.cmpi ne, %146, %c0_i32_82 : i32
    scf.if %147 {
      %c0_83 = arith.constant 0 : index
      %c0_84 = arith.constant 0 : index
      %c0_85 = arith.constant 0 : index
      %148 = vector.load %arg18[%c0_83, %c0_84, %c0_85] : memref<2x8x32xf32, #tpu.memory_space<vmem>>, vector<2x8x32xf32>
      %c0_86 = arith.constant 0 : index
      %c0_87 = arith.constant 0 : index
      %c0_88 = arith.constant 0 : index
      %149 = vector.load %arg15[%c0_86, %c0_87, %c0_88] : memref<2x8x32xf32, #tpu.memory_space<vmem>>, vector<2x8x32xf32>
      tpu.vector_store %arg15[%c0_86, %c0_87, %c0_88], %148 {strides = array<i32>} : memref<2x8x32xf32, #tpu.memory_space<vmem>>, vector<2x8x32xf32>,
      %c0_89 = arith.constant 0 : index
      %c0_90 = arith.constant 0 : index
      %c0_91 = arith.constant 0 : index
      %150 = vector.load %arg19[%c0_89, %c0_90, %c0_91] : memref<2x8x32xf32, #tpu.memory_space<vmem>>, vector<2x8x32xf32>
      %c0_92 = arith.constant 0 : index
      %c0_93 = arith.constant 0 : index
      %c0_94 = arith.constant 0 : index
      %151 = vector.load %arg16[%c0_92, %c0_93, %c0_94] : memref<2x8x32xf32, #tpu.memory_space<vmem>>, vector<2x8x32xf32>
      tpu.vector_store %arg16[%c0_92, %c0_93, %c0_94], %150 {strides = array<i32>} : memref<2x8x32xf32, #tpu.memory_space<vmem>>, vector<2x8x32xf32>,
    } else {
    }
    return
  }
  func.func @transform_0(%arg0: i32) -> (i32, i32, i32) {
    %c0_i32 = arith.constant 0 : i32
    %c0_i32_0 = arith.constant 0 : i32
    %c0_i32_1 = arith.constant 0 : i32
    return %arg0, %c0_i32, %c0_i32_0 : i32, i32, i32
  }
  func.func @transform_1(%arg0: i32) -> (i32, i32, i32) {
    %c0_i32 = arith.constant 0 : i32
    %c0_i32_0 = arith.constant 0 : i32
    %c0_i32_1 = arith.constant 0 : i32
    %c0_i32_2 = arith.constant 0 : i32
    return %c0_i32, %c0_i32_0, %c0_i32_1 : i32, i32, i32
  }
  func.func @transform_2(%arg0: i32) -> (i32, i32, i32) {
    %c0_i32 = arith.constant 0 : i32
    %c0_i32_0 = arith.constant 0 : i32
    %c0_i32_1 = arith.constant 0 : i32
    %c0_i32_2 = arith.constant 0 : i32
    return %c0_i32, %c0_i32_0, %c0_i32_1 : i32, i32, i32
  }
  func.func @transform_3(%arg0: i32) -> (i32, i32, i32) {
    %c0_i32 = arith.constant 0 : i32
    %c0_i32_0 = arith.constant 0 : i32
    %c0_i32_1 = arith.constant 0 : i32
    %c0_i32_2 = arith.constant 0 : i32
    return %c0_i32, %c0_i32_0, %c0_i32_1 : i32, i32, i32
  }
  func.func @transform_4(%arg0: i32) -> (i32, i32, i32) {
    %c0_i32 = arith.constant 0 : i32
    %c0_i32_0 = arith.constant 0 : i32
    %c0_i32_1 = arith.constant 0 : i32
    %c0_i32_2 = arith.constant 0 : i32
    return %c0_i32, %c0_i32_0, %c0_i32_1 : i32, i32, i32
  }
  func.func @transform_5(%arg0: i32) -> (i32, i32, i32) {
    %c0_i32 = arith.constant 0 : i32
    %c0_i32_0 = arith.constant 0 : i32
    %c0_i32_1 = arith.constant 0 : i32
    %c0_i32_2 = arith.constant 0 : i32
    return %c0_i32, %c0_i32_0, %c0_i32_1 : i32, i32, i32
  }
  func.func @transform_6(%arg0: i32) -> (i32, i32, i32) {
    %c0_i32 = arith.constant 0 : i32
    %c0_i32_0 = arith.constant 0 : i32
    %c0_i32_1 = arith.constant 0 : i32
    %c0_i32_2 = arith.constant 0 : i32
    return %c0_i32, %c0_i32_0, %c0_i32_1 : i32, i32, i32
  }
  func.func @transform_7(%arg0: i32) -> (i32, i32) {
    %c0_i32 = arith.constant 0 : i32
    %c0_i32_0 = arith.constant 0 : i32
    %c0_i32_1 = arith.constant 0 : i32
    return %c0_i32, %c0_i32_0 : i32, i32
  }
  func.func @transform_8(%arg0: i32) -> (i32, i32) {
    %c0_i32 = arith.constant 0 : i32
    %c0_i32_0 = arith.constant 0 : i32
    %c0_i32_1 = arith.constant 0 : i32
    return %c0_i32, %c0_i32_0 : i32, i32
  }
  func.func @transform_9(%arg0: i32) -> (i32, i32) {
    %c0_i32 = arith.constant 0 : i32
    %c0_i32_0 = arith.constant 0 : i32
    %c0_i32_1 = arith.constant 0 : i32
    return %c0_i32, %c0_i32_0 : i32, i32
  }
  func.func @transform_10(%arg0: i32) -> (i32, i32) {
    %c0_i32 = arith.constant 0 : i32
    %c0_i32_0 = arith.constant 0 : i32
    %c0_i32_1 = arith.constant 0 : i32
    return %c0_i32, %c0_i32_0 : i32, i32
  }
  func.func @transform_11(%arg0: i32) -> (i32, i32) {
    %c0_i32 = arith.constant 0 : i32
    %c0_i32_0 = arith.constant 0 : i32
    %c0_i32_1 = arith.constant 0 : i32
    return %c0_i32, %c0_i32_0 : i32, i32
  }
  func.func @transform_12(%arg0: i32) -> (i32, i32) {
    %c0_i32 = arith.constant 0 : i32
    %c0_i32_0 = arith.constant 0 : i32
    %c0_i32_1 = arith.constant 0 : i32
    return %c0_i32, %c0_i32_0 : i32, i32
  }
  func.func @transform_13(%arg0: i32) -> (i32, i32, i32) {
    %c0_i32 = arith.constant 0 : i32
    %c0_i32_0 = arith.constant 0 : i32
    %c0_i32_1 = arith.constant 0 : i32
    return %arg0, %c0_i32, %c0_i32_0 : i32, i32, i32
  }
  func.func @transform_14(%arg0: i32) -> (i32, i32, i32) {
    %c0_i32 = arith.constant 0 : i32
    %c0_i32_0 = arith.constant 0 : i32
    %c0_i32_1 = arith.constant 0 : i32
    %c0_i32_2 = arith.constant 0 : i32
    return %c0_i32, %c0_i32_0, %c0_i32_1 : i32, i32, i32
  }
  func.func @transform_15(%arg0: i32) -> (i32, i32, i32) {
    %c0_i32 = arith.constant 0 : i32
    %c0_i32_0 = arith.constant 0 : i32
    %c0_i32_1 = arith.constant 0 : i32
    %c0_i32_2 = arith.constant 0 : i32
    return %c0_i32, %c0_i32_0, %c0_i32_1 : i32, i32, i32
  }
  func.func @transform_16(%arg0: i32) -> (i32, i32, i32) {
    %c0_i32 = arith.constant 0 : i32
    %c0_i32_0 = arith.constant 0 : i32
    %c0_i32_1 = arith.constant 0 : i32
    return %arg0, %c0_i32, %c0_i32_0 : i32, i32, i32
  }
}

</mosaic_0001>

<llo_original>
// kernel: decoder_decode.1
$region0: #{decoder_decode.1}
  #allocation0 [shape = 'u32[]', space=smem, size = 0x4, offset = 0x4, fixed_abs, tag = 'smem constant byte address 0x4 - core index']
  #allocation1 [shape = 'u32[72,128]{1,0:T(1,128)}', space=vmem, size = 0x9000, scoped, tag = 'internal scratch']
  #allocation2 [shape = 'f32[2,8,32]{2,1,0:T(8,128)}', space=vmem, size = 0x2000, scoped, tag = 'scratch operand']
  #allocation3 [shape = 'f32[2,8,32]{2,1,0:T(8,128)}', space=vmem, size = 0x2000, scoped, tag = 'scratch operand']
  #allocation4 [shape = 'f32[8,8,32]{2,1,0:T(8,128)}', space=vmem, size = 0x8000, scoped, tag = 'scratch operand']
  %s0 = inlined_call_operand.vmem [shape: f32[1,8,32], index: 0, kind: input, shape index: {}]
  %s1 = inlined_call_operand.vmem [shape: f32[2,8,32], index: 1, kind: input, shape index: {}, may-alias: {1,14}]
  %s2 = inlined_call_operand.vmem [shape: f32[2,8,32], index: 2, kind: input, shape index: {}, may-alias: {2,15}]
  %s3 = inlined_call_operand.vmem [shape: f32[8,8,32], index: 3, kind: input, shape index: {}]
  %s4 = inlined_call_operand.vmem [shape: f32[2,32,128], index: 4, kind: input, shape index: {}]
  %s5 = inlined_call_operand.vmem [shape: f32[2,32,128], index: 5, kind: input, shape index: {}]
  %s6 = inlined_call_operand.vmem [shape: f32[2,1,128], index: 6, kind: input, shape index: {}]
  %s7 = inlined_call_operand.vmem [shape: f32[128,32], index: 7, kind: input, shape index: {}]
  %s8 = inlined_call_operand.vmem [shape: f32[3,32], index: 8, kind: input, shape index: {}]
  %s9 = inlined_call_operand.vmem [shape: f32[32,16], index: 9, kind: input, shape index: {}]
  %s10 = inlined_call_operand.vmem [shape: f32[1,16], index: 10, kind: input, shape index: {}]
  %s11 = inlined_call_operand.vmem [shape: f32[16,8], index: 11, kind: input, shape index: {}]
  %s12 = inlined_call_operand.vmem [shape: f32[1,8], index: 12, kind: input, shape index: {}]
  %s13 = inlined_call_operand.vmem [shape: f32[1,8,8], index: 13, kind: output, shape index: {0}]
  %s14 = inlined_call_operand.vmem [shape: f32[2,8,32], index: 14, kind: output, shape index: {1}, may-alias: {1,14}]
  %s15 = inlined_call_operand.vmem [shape: f32[2,8,32], index: 15, kind: output, shape index: {2}, may-alias: {2,15}]
  %s16 = inlined_call_operand.vmem [shape: f32[1,8,8], index: 16, kind: output, shape index: {3}]
  %17 = xla_tuple %s13, %s14, %s15, %s16
  %s18 = sld [smem:[#allocation0]]
  $region94: #{decoder_decode.1} parent=0
    _
  %s20 = ssub.s32 1, %s18
  %s21 = scalar_select 0, %s20, %s18
  // Predicated region
  $region2: #{decoder_decode.1} parent=0 // pred_check
    _
  $region3: #{decoder_decode.1} parent=0 // pred_check_branch
    %23 = sbr.rel (0) target = $region5
  $region4: #{decoder_decode.1} parent=0 // pred_region
    _
  $region5: #{decoder_decode.1} parent=0 // pred_fallthru
    _
  // Predicated region
  $region6: #{decoder_decode.1} parent=0 // pred_check
    _
  $region7: #{decoder_decode.1} parent=0 // pred_check_branch
    %25 = sbr.rel (0) target = $region9
  $region8: #{decoder_decode.1} parent=0 // pred_region
    _
  $region9: #{decoder_decode.1} parent=0 // pred_fallthru
    _
  // Predicated region
  $region10: #{decoder_decode.1} parent=0 // pred_check
    _
  $region11: #{decoder_decode.1} parent=0 // pred_check_branch
    %27 = sbr.rel (0) target = $region13
  $region12: #{decoder_decode.1} parent=0 // pred_region
    _
  $region13: #{decoder_decode.1} parent=0 // pred_fallthru
    _
  // Predicated region
  $region14: #{decoder_decode.1} parent=0 // pred_check
    _
  $region15: #{decoder_decode.1} parent=0 // pred_check_branch
    %29 = sbr.rel (0) target = $region17
  $region16: #{decoder_decode.1} parent=0 // pred_region
    _
  $region17: #{decoder_decode.1} parent=0 // pred_fallthru
    _
  // Predicated region
  $region18: #{decoder_decode.1} parent=0 // pred_check
    _
  $region19: #{decoder_decode.1} parent=0 // pred_check_branch
    %31 = sbr.rel (0) target = $region21
  $region20: #{decoder_decode.1} parent=0 // pred_region
    _
  $region21: #{decoder_decode.1} parent=0 // pred_fallthru
    _
  // Predicated region
  $region22: #{decoder_decode.1} parent=0 // pred_check
    _
  $region23: #{decoder_decode.1} parent=0 // pred_check_branch
    %33 = sbr.rel (0) target = $region25
  $region24: #{decoder_decode.1} parent=0 // pred_region
    _
  $region25: #{decoder_decode.1} parent=0 // pred_fallthru
    _
  // Predicated region
  $region26: #{decoder_decode.1} parent=0 // pred_check
    _
  $region27: #{decoder_decode.1} parent=0 // pred_check_branch
    %35 = sbr.rel (0) target = $region29
  $region28: #{decoder_decode.1} parent=0 // pred_region
    _
  $region29: #{decoder_decode.1} parent=0 // pred_fallthru
    _
  // Predicated region
  $region30: #{decoder_decode.1} parent=0 // pred_check
    _
  $region31: #{decoder_decode.1} parent=0 // pred_check_branch
    %37 = sbr.rel (0) target = $region33
  $region32: #{decoder_decode.1} parent=0 // pred_region
    _
  $region33: #{decoder_decode.1} parent=0 // pred_fallthru
    _
  // Predicated region
  $region34: #{decoder_decode.1} parent=0 // pred_check
    _
  $region35: #{decoder_decode.1} parent=0 // pred_check_branch
    %39 = sbr.rel (0) target = $region37
  $region36: #{decoder_decode.1} parent=0 // pred_region
    _
  $region37: #{decoder_decode.1} parent=0 // pred_fallthru
    _
  // Predicated region
  $region38: #{decoder_decode.1} parent=0 // pred_check
    _
  $region39: #{decoder_decode.1} parent=0 // pred_check_branch
    %41 = sbr.rel (0) target = $region41
  $region40: #{decoder_decode.1} parent=0 // pred_region
    _
  $region41: #{decoder_decode.1} parent=0 // pred_fallthru
    _
  // Predicated region
  $region42: #{decoder_decode.1} parent=0 // pred_check
    _
  $region43: #{decoder_decode.1} parent=0 // pred_check_branch
    %43 = sbr.rel (0) target = $region45
  $region44: #{decoder_decode.1} parent=0 // pred_region
    _
  $region45: #{decoder_decode.1} parent=0 // pred_fallthru
    _
  // Predicated region
  $region46: #{decoder_decode.1} parent=0 // pred_check
    _
  $region47: #{decoder_decode.1} parent=0 // pred_check_branch
    %45 = sbr.rel (0) target = $region49
  $region48: #{decoder_decode.1} parent=0 // pred_region
    _
  $region49: #{decoder_decode.1} parent=0 // pred_fallthru
    _
  // Predicated region
  $region50: #{decoder_decode.1} parent=0 // pred_check
    _
  $region51: #{decoder_decode.1} parent=0 // pred_check_branch
    %47 = sbr.rel (0) target = $region53
  $region52: #{decoder_decode.1} parent=0 // pred_region
    _
  $region53: #{decoder_decode.1} parent=0 // pred_fallthru
    _
  %v48 = vld [vmem:[%s8] sm:$0x7]
  %p49 = scmp.eq.s32.totalorder 0, 0
  // Predicated region
  $region54: #{decoder_decode.1} parent=0 // pred_check
    %p50 = pneg %p49
  $region55: #{decoder_decode.1} parent=0 // pred_check_branch
    %52 = sbr.rel (%p50) target = $region57
  $region56: #{decoder_decode.1} parent=0 // pred_region
    %v53 = vld [vmem:[%s1] sm:$0xff]
    %v54 = vld [vmem:[%s1 + $0x8] sm:$0xff]
    %vm55 = vcmask 261120
    %56 = vst.msk [vmem:[#allocation2] sm:$0xff] %vm55, %v53
    %57 = vst.msk [vmem:[#allocation2 + $0x8] sm:$0xff] %vm55, %v54
    %v58 = vld [vmem:[%s2] sm:$0xff]
    %v59 = vld [vmem:[%s2 + $0x8] sm:$0xff]
    %60 = vst.msk [vmem:[#allocation3] sm:$0xff] %vm55, %v58
    %61 = vst.msk [vmem:[#allocation3 + $0x8] sm:$0xff] %vm55, %v59
    %v62 = vld [vmem:[%s7 + $0x20] sm:$0xff]
    %v63 = vld [vmem:[%s7 + $0x28] sm:$0xff]
    %v64 = vld [vmem:[%s7 + $0x30] sm:$0xff]
    %v65 = vld [vmem:[%s7 + $0x38] sm:$0xff]
    %v66 = vld [vmem:[%s3] sm:$0xff]
    %v67 = vld [vmem:[%s3 + $0x8] sm:$0xff]
    %v68 = vld [vmem:[%s3 + $0x10] sm:$0xff]
    %v69 = vld [vmem:[%s3 + $0x18] sm:$0xff]
    %v70 = vld [vmem:[%s3 + $0x20] sm:$0xff]
    %v71 = vld [vmem:[%s3 + $0x28] sm:$0xff]
    %v72 = vld [vmem:[%s3 + $0x30] sm:$0xff]
    %v73 = vld [vmem:[%s3 + $0x38] sm:$0xff]
    %v74 = vperm.slane %v48, 0
    %v76 = vsel %vm55, %v66, 0
    %v79 = vsel %vm55, %v67, 0
    %v82 = vsel %vm55, %v68, 0
    %v85 = vsel %vm55, %v69, 0
    %v88 = vsel %vm55, %v70, 0
    %v91 = vsel %vm55, %v71, 0
    %v94 = vsel %vm55, %v72, 0
    %v97 = vsel %vm55, %v73, 0
    %99 = vmatpush.msra.mxu0 0.0
    %100 = vmatpush.msra.mxu0 0.0
    %101 = vmatpush.msra.mxu0 0.0
    %102 = vmatpush.msra.mxu0 0.0
    %103 = vmatpush.msra.mxu0 0.0
    %104 = vmatpush.msra.mxu0 0.0
    %105 = vmatpush.msra.mxu0 0.0
    %106 = vmatpush.msra.mxu0 0.0
    %107 = vmatpush.msra.mxu0 0.0
    %108 = vmatpush.msra.mxu0 0.0
    %109 = vmatpush.msra.mxu0 0.0
    %110 = vmatpush.msra.mxu0 0.0
    %111 = vmatpush.msra.mxu0 %v65
    %112 = vmatpush.msra.mxu0 %v64
    %113 = vmatpush.msra.mxu0 %v63
    %114 = vmatpush.msra.mxu0 %v62
    %115 = vmatmul.f32.gmra.mxu0 %v76
    %v116 = vpop.f32.mrf.mxu0
    %v117 = vadd.f32 %v74, %v116
    %118 = vmatmul.f32.gmra.mxu0 %v79
    %v119 = vpop.f32.mrf.mxu0
    %v120 = vadd.f32 %v74, %v119
    %121 = vmatmul.f32.gmra.mxu0 %v82
    %v122 = vpop.f32.mrf.mxu0
    %v123 = vadd.f32 %v74, %v122
    %124 = vmatmul.f32.gmra.mxu0 %v85
    %v125 = vpop.f32.mrf.mxu0
    %v126 = vadd.f32 %v74, %v125
    %127 = vmatmul.f32.gmra.mxu0 %v88
    %v128 = vpop.f32.mrf.mxu0
    %v129 = vadd.f32 %v74, %v128
    %130 = vmatmul.f32.gmra.mxu0 %v91
    %v131 = vpop.f32.mrf.mxu0
    %v132 = vadd.f32 %v74, %v131
    %133 = vmatmul.f32.gmra.mxu0 %v94
    %v134 = vpop.f32.mrf.mxu0
    %v135 = vadd.f32 %v74, %v134
    %136 = vmatmul.f32.gmra.mxu0 %v97
    %v137 = vpop.f32.mrf.mxu0
    %v138 = vadd.f32 %v74, %v137
    %139 = vdwg.mxu0
    %140 = vst.msk [vmem:[#allocation4] sm:$0xff] %vm55, %v117
    %141 = vst.msk [vmem:[#allocation4 + $0x8] sm:$0xff] %vm55, %v120
    %142 = vst.msk [vmem:[#allocation4 + $0x10] sm:$0xff] %vm55, %v123
    %143 = vst.msk [vmem:[#allocation4 + $0x18] sm:$0xff] %vm55, %v126
    %144 = vst.msk [vmem:[#allocation4 + $0x20] sm:$0xff] %vm55, %v129
    %145 = vst.msk [vmem:[#allocation4 + $0x28] sm:$0xff] %vm55, %v132
    %146 = vst.msk [vmem:[#allocation4 + $0x30] sm:$0xff] %vm55, %v135
    %147 = vst.msk [vmem:[#allocation4 + $0x38] sm:$0xff] %vm55, %v138
  $region57: #{decoder_decode.1} parent=0 // pred_fallthru
    _
  %v148 = vld [vmem:[#allocation2] sm:$0xff]
  %v149 = vld [vmem:[#allocation2 + $0x8] sm:$0xff]
  %v150 = vld [vmem:[#allocation3] sm:$0xff]
  %v151 = vld [vmem:[#allocation3 + $0x8] sm:$0xff]
  %v152 = vld [vmem:[%s0] sm:$0xff]
  %v153 = vld [vmem:[%s7] sm:$0xff]
  %v154 = vld [vmem:[%s7 + $0x8] sm:$0xff]
  %v155 = vld [vmem:[%s7 + $0x10] sm:$0xff]
  %v156 = vld [vmem:[%s7 + $0x18] sm:$0xff]
  %vm157 = vcmask 261120
  %v159 = vsel %vm157, %v149, 0
  %161 = vmatpush.msra.mxu0 0.0
  %162 = vmatpush.msra.mxu0 0.0
  %163 = vmatpush.msra.mxu0 0.0
  %164 = vmatpush.msra.mxu0 0.0
  %165 = vmatpush.msra.mxu0 0.0
  %166 = vmatpush.msra.mxu0 0.0
  %167 = vmatpush.msra.mxu0 0.0
  %168 = vmatpush.msra.mxu0 0.0
  %169 = vmatpush.msra.mxu0 0.0
  %170 = vmatpush.msra.mxu0 0.0
  %171 = vmatpush.msra.mxu0 0.0
  %172 = vmatpush.msra.mxu0 0.0
  %173 = vmatpush.msra.mxu0 %v156
  %174 = vmatpush.msra.mxu0 %v155
  %175 = vmatpush.msra.mxu0 %v154
  %176 = vmatpush.msra.mxu0 %v153
  %177 = vmatmul.f32.gmra.mxu0 %v159
  %v178 = vpop.f32.mrf.mxu0
  %v179 = vadd.f32 0.0, %v178
  %180 = vdwg.mxu0
  %v181 = vld [vmem:[#allocation4] sm:$0xff]
  %v182 = vld [vmem:[#allocation4 + $0x8] sm:$0xff]
  %v183 = vld [vmem:[#allocation4 + $0x10] sm:$0xff]
  %v184 = vld [vmem:[#allocation4 + $0x18] sm:$0xff]
  %v185 = vld [vmem:[#allocation4 + $0x20] sm:$0xff]
  %v186 = vld [vmem:[#allocation4 + $0x28] sm:$0xff]
  %v187 = vld [vmem:[#allocation4 + $0x30] sm:$0xff]
  %v188 = vld [vmem:[#allocation4 + $0x38] sm:$0xff]
  %v190 = vrot.slane %v179, 1
  %v191 = vrot.slane %v179, 2
  %v192 = vrot.slane %v179, 3
  %v193 = vrot.slane %v179, 4
  %v194 = vrot.slane %v179, 5
  %v195 = vrot.slane %v179, 6
  %v196 = vrot.slane %v179, 7
  %v197 = vperm.slane %v179, 0
  %v198 = vperm.slane %v190, 0
  %v199 = vperm.slane %v191, 0
  %v200 = vperm.slane %v192, 0
  %v201 = vperm.slane %v193, 0
  %v202 = vperm.slane %v194, 0
  %v203 = vperm.slane %v195, 0
  %v204 = vperm.slane %v196, 0
  %v213 = vadd.f32 %v181, %v197
  %v214 = vadd.f32 %v182, %v198
  %v215 = vadd.f32 %v183, %v199
  %v216 = vadd.f32 %v184, %v200
  %v217 = vadd.f32 %v185, %v201
  %v218 = vadd.f32 %v186, %v202
  %v219 = vadd.f32 %v187, %v203
  %v220 = vadd.f32 %v188, %v204
  %v221 = vtanh.pop %v213
  %v222 = vtanh.pop %v214
  %v223 = vtanh.pop %v215
  %v224 = vtanh.pop %v216
  %v225 = vtanh.pop %v217
  %v226 = vtanh.pop %v218
  %v227 = vtanh.pop %v219
  %v228 = vtanh.pop %v220
  %v229 = vperm.slane %v48, 1
  %v230 = vmul.f32 %v221, %v229
  %v231 = vmul.f32 %v222, %v229
  %v232 = vmul.f32 %v223, %v229
  %v233 = vmul.f32 %v224, %v229
  %v234 = vmul.f32 %v225, %v229
  %v235 = vmul.f32 %v226, %v229
  %v236 = vmul.f32 %v227, %v229
  %v237 = vmul.f32 %v228, %v229
  %v238 = vsel %vm157, %v230, 0.0
  %239 = vadd.xlane.f32.xlu0 %v238
  %v240 = vpop.xlane.xlu0 %239
  %v241 = vsel %vm157, %v231, 0.0
  %242 = vadd.xlane.f32.xlu0 %v241
  %v243 = vpop.xlane.xlu0 %242
  %v244 = vsel %vm157, %v232, 0.0
  %245 = vadd.xlane.f32.xlu0 %v244
  %v246 = vpop.xlane.xlu0 %245
  %v247 = vsel %vm157, %v233, 0.0
  %248 = vadd.xlane.f32.xlu0 %v247
  %v249 = vpop.xlane.xlu0 %248
  %v250 = vsel %vm157, %v234, 0.0
  %251 = vadd.xlane.f32.xlu0 %v250
  %v252 = vpop.xlane.xlu0 %251
  %v253 = vsel %vm157, %v235, 0.0
  %254 = vadd.xlane.f32.xlu0 %v253
  %v255 = vpop.xlane.xlu0 %254
  %v256 = vsel %vm157, %v236, 0.0
  %257 = vadd.xlane.f32.xlu0 %v256
  %v258 = vpop.xlane.xlu0 %257
  %v259 = vsel %vm157, %v237, 0.0
  %260 = vadd.xlane.f32.xlu0 %v259
  %v261 = vpop.xlane.xlu0 %260
  %v270 = vlaneseq
  %v271 = vand.u32 %v270, 127
  %v272 = vperm.slane %v240, %v271
  %v273 = vperm.slane %v243, %v271
  %v274 = vperm.slane %v246, %v271
  %v275 = vperm.slane %v249, %v271
  %v276 = vperm.slane %v252, %v271
  %v277 = vperm.slane %v255, %v271
  %v278 = vperm.slane %v258, %v271
  %v279 = vperm.slane %v261, %v271
  %vm280 = vcmask 1041409
  %v281 = vsel %vm280, %v273, %v272
  %vm282 = vcmask 1042434
  %v283 = vsel %vm282, %v274, %v281
  %vm284 = vcmask 1043459
  %v285 = vsel %vm284, %v275, %v283
  %vm286 = vcmask 1044484
  %v287 = vsel %vm286, %v276, %v285
  %vm288 = vcmask 1045509
  %v289 = vsel %vm288, %v277, %v287
  %vm290 = vcmask 1046534
  %v291 = vsel %vm290, %v278, %v289
  %vm292 = vcmask 1047559
  %v293 = vsel %vm292, %v279, %v291
  %vm295 = vcmask 64512
  %v296 = vsel %vm295, %v293, -inf
  %297 = vmax.xlane.f32.xlu0 %v296
  %v298 = vpop.xlane.xlu0 %297
  %v300 = vperm.slane %v298, 0
  %v301 = vperm.slane %v298, 1
  %v302 = vperm.slane %v298, 2
  %v303 = vperm.slane %v298, 3
  %v304 = vperm.slane %v298, 4
  %v305 = vperm.slane %v298, 5
  %v306 = vperm.slane %v298, 6
  %v307 = vperm.slane %v298, 7
  %v316 = vsub.f32 %v240, %v300
  %v317 = vsub.f32 %v243, %v301
  %v318 = vsub.f32 %v246, %v302
  %v319 = vsub.f32 %v249, %v303
  %v320 = vsub.f32 %v252, %v304
  %v321 = vsub.f32 %v255, %v305
  %v322 = vsub.f32 %v258, %v306
  %v323 = vsub.f32 %v261, %v307
  %v324 = vmul.f32 %v316, 1.442695
  %v325 = vpow.pop %v324
  %v326 = vmul.f32 %v317, 1.442695
  %v327 = vpow.pop %v326
  %v328 = vmul.f32 %v318, 1.442695
  %v329 = vpow.pop %v328
  %v330 = vmul.f32 %v319, 1.442695
  %v331 = vpow.pop %v330
  %v332 = vmul.f32 %v320, 1.442695
  %v333 = vpow.pop %v332
  %v334 = vmul.f32 %v321, 1.442695
  %v335 = vpow.pop %v334
  %v336 = vmul.f32 %v322, 1.442695
  %v337 = vpow.pop %v336
  %v338 = vmul.f32 %v323, 1.442695
  %v339 = vpow.pop %v338
  %348 = vset.pattern.permute.xlu0 0
  %349 = vperm.xlu0 %348, %v325
  %v350 = vpop.permute.xlu0 %349
  %351 = vset.pattern.permute.xlu0 0
  %352 = vperm.xlu0 %351, %v327
  %v353 = vpop.permute.xlu0 %352
  %354 = vset.pattern.permute.xlu0 0
  %355 = vperm.xlu0 %354, %v329
  %v356 = vpop.permute.xlu0 %355
  %357 = vset.pattern.permute.xlu0 0
  %358 = vperm.xlu0 %357, %v331
  %v359 = vpop.permute.xlu0 %358
  %360 = vset.pattern.permute.xlu0 0
  %361 = vperm.xlu0 %360, %v333
  %v362 = vpop.permute.xlu0 %361
  %363 = vset.pattern.permute.xlu0 0
  %364 = vperm.xlu0 %363, %v335
  %v365 = vpop.permute.xlu0 %364
  %366 = vset.pattern.permute.xlu0 0
  %367 = vperm.xlu0 %366, %v337
  %v368 = vpop.permute.xlu0 %367
  %369 = vset.pattern.permute.xlu0 0
  %370 = vperm.xlu0 %369, %v339
  %v371 = vpop.permute.xlu0 %370
  %v372 = vperm.slane %v350, %v271
  %v373 = vperm.slane %v353, %v271
  %v374 = vperm.slane %v356, %v271
  %v375 = vperm.slane %v359, %v271
  %v376 = vperm.slane %v362, %v271
  %v377 = vperm.slane %v365, %v271
  %v378 = vperm.slane %v368, %v271
  %v379 = vperm.slane %v371, %v271
  %v380 = vsel %vm280, %v373, %v372
  %v381 = vsel %vm282, %v374, %v380
  %v382 = vsel %vm284, %v375, %v381
  %v383 = vsel %vm286, %v376, %v382
  %v384 = vsel %vm288, %v377, %v383
  %v385 = vsel %vm290, %v378, %v384
  %v386 = vsel %vm292, %v379, %v385
  %v388 = vsel %vm295, %v386, 0.0
  %389 = vadd.xlane.f32.xlu0 %v388
  %v390 = vpop.xlane.xlu0 %389
  %v392 = vperm.slane %v390, 0
  %v393 = vperm.slane %v390, 1
  %v394 = vperm.slane %v390, 2
  %v395 = vperm.slane %v390, 3
  %v396 = vperm.slane %v390, 4
  %v397 = vperm.slane %v390, 5
  %v398 = vperm.slane %v390, 6
  %v399 = vperm.slane %v390, 7
  %v408 = vrcp.pop %v392
  %v409 = vmul.f32 %v392, %v408
  %v410 = vsub.f32 1.0, %v409
  %v411 = vmul.f32 %v408, %v410
  %v412 = vadd.f32 %v408, %v411
  %vm413 = vweird.f32 %v392
  %vm414 = vweird.f32 %v408
  %vm415 = vmor %vm413, %vm414
  %v416 = vsel %vm415, %v408, %v412
  %v417 = vand.u32 2147483647, %v392
  %vm418 = vcmp.eq.f32.partialorder %v417, 8.507059e+37
  %v419 = vand.u32 %v392, 2147483648
  %v420 = vor.u32 1.1754944e-38, %v419
  %v421 = vsel %vm418, %v420, %v416
  %v422 = vmul.f32 %v325, %v421
  %v423 = vrcp.pop %v393
  %v424 = vmul.f32 %v393, %v423
  %v425 = vsub.f32 1.0, %v424
  %v426 = vmul.f32 %v423, %v425
  %v427 = vadd.f32 %v423, %v426
  %vm428 = vweird.f32 %v393
  %vm429 = vweird.f32 %v423
  %vm430 = vmor %vm428, %vm429
  %v431 = vsel %vm430, %v423, %v427
  %v432 = vand.u32 2147483647, %v393
  %vm433 = vcmp.eq.f32.partialorder %v432, 8.507059e+37
  %v434 = vand.u32 %v393, 2147483648
  %v435 = vor.u32 1.1754944e-38, %v434
  %v436 = vsel %vm433, %v435, %v431
  %v437 = vmul.f32 %v327, %v436
  %v438 = vrcp.pop %v394
  %v439 = vmul.f32 %v394, %v438
  %v440 = vsub.f32 1.0, %v439
  %v441 = vmul.f32 %v438, %v440
  %v442 = vadd.f32 %v438, %v441
  %vm443 = vweird.f32 %v394
  %vm444 = vweird.f32 %v438
  %vm445 = vmor %vm443, %vm444
  %v446 = vsel %vm445, %v438, %v442
  %v447 = vand.u32 2147483647, %v394
  %vm448 = vcmp.eq.f32.partialorder %v447, 8.507059e+37
  %v449 = vand.u32 %v394, 2147483648
  %v450 = vor.u32 1.1754944e-38, %v449
  %v451 = vsel %vm448, %v450, %v446
  %v452 = vmul.f32 %v329, %v451
  %v453 = vrcp.pop %v395
  %v454 = vmul.f32 %v395, %v453
  %v455 = vsub.f32 1.0, %v454
  %v456 = vmul.f32 %v453, %v455
  %v457 = vadd.f32 %v453, %v456
  %vm458 = vweird.f32 %v395
  %vm459 = vweird.f32 %v453
  %vm460 = vmor %vm458, %vm459
  %v461 = vsel %vm460, %v453, %v457
  %v462 = vand.u32 2147483647, %v395
  %vm463 = vcmp.eq.f32.partialorder %v462, 8.507059e+37
  %v464 = vand.u32 %v395, 2147483648
  %v465 = vor.u32 1.1754944e-38, %v464
  %v466 = vsel %vm463, %v465, %v461
  %v467 = vmul.f32 %v331, %v466
  %v468 = vrcp.pop %v396
  %v469 = vmul.f32 %v396, %v468
  %v470 = vsub.f32 1.0, %v469
  %v471 = vmul.f32 %v468, %v470
  %v472 = vadd.f32 %v468, %v471
  %vm473 = vweird.f32 %v396
  %vm474 = vweird.f32 %v468
  %vm475 = vmor %vm473, %vm474
  %v476 = vsel %vm475, %v468, %v472
  %v477 = vand.u32 2147483647, %v396
  %vm478 = vcmp.eq.f32.partialorder %v477, 8.507059e+37
  %v479 = vand.u32 %v396, 2147483648
  %v480 = vor.u32 1.1754944e-38, %v479
  %v481 = vsel %vm478, %v480, %v476
  %v482 = vmul.f32 %v333, %v481
  %v483 = vrcp.pop %v397
  %v484 = vmul.f32 %v397, %v483
  %v485 = vsub.f32 1.0, %v484
  %v486 = vmul.f32 %v483, %v485
  %v487 = vadd.f32 %v483, %v486
  %vm488 = vweird.f32 %v397
  %vm489 = vweird.f32 %v483
  %vm490 = vmor %vm488, %vm489
  %v491 = vsel %vm490, %v483, %v487
  %v492 = vand.u32 2147483647, %v397
  %vm493 = vcmp.eq.f32.partialorder %v492, 8.507059e+37
  %v494 = vand.u32 %v397, 2147483648
  %v495 = vor.u32 1.1754944e-38, %v494
  %v496 = vsel %vm493, %v495, %v491
  %v497 = vmul.f32 %v335, %v496
  %v498 = vrcp.pop %v398
  %v499 = vmul.f32 %v398, %v498
  %v500 = vsub.f32 1.0, %v499
  %v501 = vmul.f32 %v498, %v500
  %v502 = vadd.f32 %v498, %v501
  %vm503 = vweird.f32 %v398
  %vm504 = vweird.f32 %v498
  %vm505 = vmor %vm503, %vm504
  %v506 = vsel %vm505, %v498, %v502
  %v507 = vand.u32 2147483647, %v398
  %vm508 = vcmp.eq.f32.partialorder %v507, 8.507059e+37
  %v509 = vand.u32 %v398, 2147483648
  %v510 = vor.u32 1.1754944e-38, %v509
  %v511 = vsel %vm508, %v510, %v506
  %v512 = vmul.f32 %v337, %v511
  %v513 = vrcp.pop %v399
  %v514 = vmul.f32 %v399, %v513
  %v515 = vsub.f32 1.0, %v514
  %v516 = vmul.f32 %v513, %v515
  %v517 = vadd.f32 %v513, %v516
  %vm518 = vweird.f32 %v399
  %vm519 = vweird.f32 %v513
  %vm520 = vmor %vm518, %vm519
  %v521 = vsel %vm520, %v513, %v517
  %v522 = vand.u32 2147483647, %v399
  %vm523 = vcmp.eq.f32.partialorder %v522, 8.507059e+37
  %v524 = vand.u32 %v399, 2147483648
  %v525 = vor.u32 1.1754944e-38, %v524
  %v526 = vsel %vm523, %v525, %v521
  %v527 = vmul.f32 %v339, %v526
  %536 = vset.pattern.permute.xlu0 0
  %537 = vperm.xlu0 %536, %v422
  %v538 = vpop.permute.xlu0 %537
  %539 = vset.pattern.permute.xlu0 0
  %540 = vperm.xlu0 %539, %v437
  %v541 = vpop.permute.xlu0 %540
  %542 = vset.pattern.permute.xlu0 0
  %543 = vperm.xlu0 %542, %v452
  %v544 = vpop.permute.xlu0 %543
  %545 = vset.pattern.permute.xlu0 0
  %546 = vperm.xlu0 %545, %v467
  %v547 = vpop.permute.xlu0 %546
  %548 = vset.pattern.permute.xlu0 0
  %549 = vperm.xlu0 %548, %v482
  %v550 = vpop.permute.xlu0 %549
  %551 = vset.pattern.permute.xlu0 0
  %552 = vperm.xlu0 %551, %v497
  %v553 = vpop.permute.xlu0 %552
  %554 = vset.pattern.permute.xlu0 0
  %555 = vperm.xlu0 %554, %v512
  %v556 = vpop.permute.xlu0 %555
  %557 = vset.pattern.permute.xlu0 0
  %558 = vperm.xlu0 %557, %v527
  %v559 = vpop.permute.xlu0 %558
  %v560 = vperm.slane %v538, %v271
  %v561 = vperm.slane %v541, %v271
  %v562 = vperm.slane %v544, %v271
  %v563 = vperm.slane %v547, %v271
  %v564 = vperm.slane %v550, %v271
  %v565 = vperm.slane %v553, %v271
  %v566 = vperm.slane %v556, %v271
  %v567 = vperm.slane %v559, %v271
  %v568 = vsel %vm280, %v561, %v560
  %v569 = vsel %vm282, %v562, %v568
  %v570 = vsel %vm284, %v563, %v569
  %v571 = vsel %vm286, %v564, %v570
  %v572 = vsel %vm288, %v565, %v571
  %v573 = vsel %vm290, %v566, %v572
  %v574 = vsel %vm292, %v567, %v573
  %576 = vst.msk [vmem:[%s16] sm:$0xff] %vm295, %v574
  %v577 = vld [vmem:[%s3] sm:$0xff]
  %v578 = vld [vmem:[%s3 + $0x8] sm:$0xff]
  %v579 = vld [vmem:[%s3 + $0x10] sm:$0xff]
  %v580 = vld [vmem:[%s3 + $0x18] sm:$0xff]
  %v581 = vld [vmem:[%s3 + $0x20] sm:$0xff]
  %v582 = vld [vmem:[%s3 + $0x28] sm:$0xff]
  %v583 = vld [vmem:[%s3 + $0x30] sm:$0xff]
  %v584 = vld [vmem:[%s3 + $0x38] sm:$0xff]
  %v593 = vmul.f32 %v538, %v577
  %v594 = vmul.f32 %v541, %v578
  %v595 = vmul.f32 %v544, %v579
  %v596 = vmul.f32 %v547, %v580
  %v597 = vmul.f32 %v550, %v581
  %v598 = vmul.f32 %v553, %v582
  %v599 = vmul.f32 %v556, %v583
  %v600 = vmul.f32 %v559, %v584
  %v601 = vsel %vm157, %v593, 0.0
  %v602 = vrot.slane %v601, 4
  %v603 = vadd.f32 %v601, %v602
  %v604 = vrot.slane %v603, 2
  %v605 = vadd.f32 %v603, %v604
  %v606 = vrot.slane %v605, 1
  %v607 = vadd.f32 %v605, %v606
  %v608 = vsel %vm157, %v594, 0.0
  %v609 = vrot.slane %v608, 4
  %v610 = vadd.f32 %v608, %v609
  %v611 = vrot.slane %v610, 2
  %v612 = vadd.f32 %v610, %v611
  %v613 = vrot.slane %v612, 1
  %v614 = vadd.f32 %v612, %v613
  %v615 = vsel %vm157, %v595, 0.0
  %v616 = vrot.slane %v615, 4
  %v617 = vadd.f32 %v615, %v616
  %v618 = vrot.slane %v617, 2
  %v619 = vadd.f32 %v617, %v618
  %v620 = vrot.slane %v619, 1
  %v621 = vadd.f32 %v619, %v620
  %v622 = vsel %vm157, %v596, 0.0
  %v623 = vrot.slane %v622, 4
  %v624 = vadd.f32 %v622, %v623
  %v625 = vrot.slane %v624, 2
  %v626 = vadd.f32 %v624, %v625
  %v627 = vrot.slane %v626, 1
  %v628 = vadd.f32 %v626, %v627
  %v629 = vsel %vm157, %v597, 0.0
  %v630 = vrot.slane %v629, 4
  %v631 = vadd.f32 %v629, %v630
  %v632 = vrot.slane %v631, 2
  %v633 = vadd.f32 %v631, %v632
  %v634 = vrot.slane %v633, 1
  %v635 = vadd.f32 %v633, %v634
  %v636 = vsel %vm157, %v598, 0.0
  %v637 = vrot.slane %v636, 4
  %v638 = vadd.f32 %v636, %v637
  %v639 = vrot.slane %v638, 2
  %v640 = vadd.f32 %v638, %v639
  %v641 = vrot.slane %v640, 1
  %v642 = vadd.f32 %v640, %v641
  %v643 = vsel %vm157, %v599, 0.0
  %v644 = vrot.slane %v643, 4
  %v645 = vadd.f32 %v643, %v644
  %v646 = vrot.slane %v645, 2
  %v647 = vadd.f32 %v645, %v646
  %v648 = vrot.slane %v647, 1
  %v649 = vadd.f32 %v647, %v648
  %v650 = vsel %vm157, %v600, 0.0
  %v651 = vrot.slane %v650, 4
  %v652 = vadd.f32 %v650, %v651
  %v653 = vrot.slane %v652, 2
  %v654 = vadd.f32 %v652, %v653
  %v655 = vrot.slane %v654, 1
  %v656 = vadd.f32 %v654, %v655
  %v657 = vld [vmem:[%s4] sm:$0xff]
  %v658 = vld [vmem:[%s4 + $0x8] sm:$0xff]
  %v659 = vld [vmem:[%s4 + $0x10] sm:$0xff]
  %v660 = vld [vmem:[%s4 + $0x18] sm:$0xff]
  %v661 = vld [vmem:[%s5] sm:$0xff]
  %v662 = vld [vmem:[%s5 + $0x8] sm:$0xff]
  %v663 = vld [vmem:[%s5 + $0x10] sm:$0xff]
  %v664 = vld [vmem:[%s5 + $0x18] sm:$0xff]
  %v666 = vsel %vm157, %v148, 0
  %668 = vmatpush.msra.mxu0 0.0
  %669 = vmatpush.msra.mxu0 0.0
  %670 = vmatpush.msra.mxu0 0.0
  %671 = vmatpush.msra.mxu0 0.0
  %672 = vmatpush.msra.mxu0 0.0
  %673 = vmatpush.msra.mxu0 0.0
  %674 = vmatpush.msra.mxu0 0.0
  %675 = vmatpush.msra.mxu0 0.0
  %676 = vmatpush.msra.mxu0 0.0
  %677 = vmatpush.msra.mxu0 0.0
  %678 = vmatpush.msra.mxu0 0.0
  %679 = vmatpush.msra.mxu0 0.0
  %680 = vmatpush.msra.mxu0 %v664
  %681 = vmatpush.msra.mxu0 %v663
  %682 = vmatpush.msra.mxu0 %v662
  %683 = vmatpush.msra.mxu0 %v661
  %684 = vmatmul.f32.gmra.mxu0 %v666
  %v685 = vpop.f32.mrf.mxu0
  %v686 = vadd.f32 0.0, %v685
  %687 = vdwg.mxu0
  %v689 = vsel %vm157, %v152, 0
  %691 = vmatpush.msra.mxu0 0.0
  %692 = vmatpush.msra.mxu0 0.0
  %693 = vmatpush.msra.mxu0 0.0
  %694 = vmatpush.msra.mxu0 0.0
  %695 = vmatpush.msra.mxu0 0.0
  %696 = vmatpush.msra.mxu0 0.0
  %697 = vmatpush.msra.mxu0 0.0
  %698 = vmatpush.msra.mxu0 0.0
  %699 = vmatpush.msra.mxu0 0.0
  %700 = vmatpush.msra.mxu0 0.0
  %701 = vmatpush.msra.mxu0 0.0
  %702 = vmatpush.msra.mxu0 0.0
  %703 = vmatpush.msra.mxu0 %v660
  %704 = vmatpush.msra.mxu0 %v659
  %705 = vmatpush.msra.mxu0 %v658
  %706 = vmatpush.msra.mxu0 %v657
  %707 = vmatmul.f32.gmra.mxu0 %v689
  %v708 = vpop.f32.mrf.mxu0
  %v709 = vadd.f32 %v686, %v708
  %710 = vdwg.mxu0
  %v711 = vld [vmem:[%s6] sm:$0x1]
  %v713 = vperm.slane %v711, 0
  %v715 = vadd.f32 %v709, %v713
  %v716 = vxor.u32 %v715, 2147483648
  %v717 = vmul.f32 %v716, 1.442695
  %v718 = vpow.pop %v717
  %v719 = vadd.f32 %v718, 1.0
  %v720 = vrcp.pop %v719
  %v721 = vmul.f32 %v719, %v720
  %v722 = vsub.f32 1.0, %v721
  %v723 = vmul.f32 %v720, %v722
  %v724 = vadd.f32 %v720, %v723
  %vm725 = vweird.f32 %v719
  %vm726 = vweird.f32 %v720
  %vm727 = vmor %vm725, %vm726
  %v728 = vsel %vm727, %v720, %v724
  %v729 = vand.u32 2147483647, %v719
  %vm730 = vcmp.eq.f32.partialorder %v729, 8.507059e+37
  %v731 = vand.u32 %v719, 2147483648
  %v732 = vor.u32 1.1754944e-38, %v731
  %v733 = vsel %vm730, %v732, %v728
  %v734 = vmul.f32 1.0, %v733
  %v735 = vtanh.pop %v715
  %vm736 = vcmp.lt.s32.totalorder %v271, 96
  %v737 = vsel %vm736, %v734, %v735
  %739 = vrot.lane.b32.xlu0 %v150, 32
  %v740 = vpop.permute.xlu0 %739
  %v742 = vmul.f32 %v737, %v740
  %744 = vrot.lane.b32.xlu0 %v737, 32
  %v745 = vpop.permute.xlu0 %744
  %v747 = vmul.f32 %v737, %v745
  %749 = vrot.lane.b32.xlu0 %v747, 32
  %v750 = vpop.permute.xlu0 %749
  %v752 = vadd.f32 %v742, %v750
  %v753 = vtanh.pop %v752
  %755 = vrot.lane.b32.xlu0 %v753, 32
  %v756 = vpop.permute.xlu0 %755
  %v758 = vmul.f32 %v737, %v756
  %760 = vrot.lane.b32.xlu0 %v758, 64
  %v761 = vpop.permute.xlu0 %760
  %763 = vst.msk [vmem:[#allocation2] sm:$0xff] %vm157, %v761
  %765 = vrot.lane.b32.xlu0 %v752, 96
  %v766 = vpop.permute.xlu0 %765
  %768 = vst.msk [vmem:[#allocation3] sm:$0xff] %vm157, %v766
  %s769 = scalar_lea.vmem %s4, 32
  %v770 = vld [vmem:[%s769] sm:$0xff]
  %v771 = vld [vmem:[%s769 + $0x8] sm:$0xff]
  %v772 = vld [vmem:[%s769 + $0x10] sm:$0xff]
  %v773 = vld [vmem:[%s769 + $0x18] sm:$0xff]
  %s774 = scalar_lea.vmem %s5, 32
  %v775 = vld [vmem:[%s774] sm:$0xff]
  %v776 = vld [vmem:[%s774 + $0x8] sm:$0xff]
  %v777 = vld [vmem:[%s774 + $0x10] sm:$0xff]
  %v778 = vld [vmem:[%s774 + $0x18] sm:$0xff]
  %779 = vmatpush.msra.mxu0 0.0
  %780 = vmatpush.msra.mxu0 0.0
  %781 = vmatpush.msra.mxu0 0.0
  %782 = vmatpush.msra.mxu0 0.0
  %783 = vmatpush.msra.mxu0 0.0
  %784 = vmatpush.msra.mxu0 0.0
  %785 = vmatpush.msra.mxu0 0.0
  %786 = vmatpush.msra.mxu0 0.0
  %787 = vmatpush.msra.mxu0 0.0
  %788 = vmatpush.msra.mxu0 0.0
  %789 = vmatpush.msra.mxu0 0.0
  %790 = vmatpush.msra.mxu0 0.0
  %791 = vmatpush.msra.mxu0 %v778
  %792 = vmatpush.msra.mxu0 %v777
  %793 = vmatpush.msra.mxu0 %v776
  %794 = vmatpush.msra.mxu0 %v775
  %795 = vmatmul.f32.gmra.mxu0 %v159
  %v796 = vpop.f32.mrf.mxu0
  %v797 = vadd.f32 0.0, %v796
  %798 = vdwg.mxu0
  %v799 = vsel %vm157, %v761, 0
  %801 = vmatpush.msra.mxu0 0.0
  %802 = vmatpush.msra.mxu0 0.0
  %803 = vmatpush.msra.mxu0 0.0
  %804 = vmatpush.msra.mxu0 0.0
  %805 = vmatpush.msra.mxu0 0.0
  %806 = vmatpush.msra.mxu0 0.0
  %807 = vmatpush.msra.mxu0 0.0
  %808 = vmatpush.msra.mxu0 0.0
  %809 = vmatpush.msra.mxu0 0.0
  %810 = vmatpush.msra.mxu0 0.0
  %811 = vmatpush.msra.mxu0 0.0
  %812 = vmatpush.msra.mxu0 0.0
  %813 = vmatpush.msra.mxu0 %v773
  %814 = vmatpush.msra.mxu0 %v772
  %815 = vmatpush.msra.mxu0 %v771
  %816 = vmatpush.msra.mxu0 %v770
  %817 = vmatmul.f32.gmra.mxu0 %v799
  %v818 = vpop.f32.mrf.mxu0
  %v819 = vadd.f32 %v797, %v818
  %820 = vdwg.mxu0
  %s821 = scalar_lea.vmem %s6, 1
  %v822 = vld [vmem:[%s821] sm:$0x1]
  %v824 = vperm.slane %v822, 0
  %v826 = vadd.f32 %v819, %v824
  %v827 = vxor.u32 %v826, 2147483648
  %v828 = vmul.f32 %v827, 1.442695
  %v829 = vpow.pop %v828
  %v830 = vadd.f32 %v829, 1.0
  %v831 = vrcp.pop %v830
  %v832 = vmul.f32 %v830, %v831
  %v833 = vsub.f32 1.0, %v832
  %v834 = vmul.f32 %v831, %v833
  %v835 = vadd.f32 %v831, %v834
  %vm836 = vweird.f32 %v830
  %vm837 = vweird.f32 %v831
  %vm838 = vmor %vm836, %vm837
  %v839 = vsel %vm838, %v831, %v835
  %v840 = vand.u32 2147483647, %v830
  %vm841 = vcmp.eq.f32.partialorder %v840, 8.507059e+37
  %v842 = vand.u32 %v830, 2147483648
  %v843 = vor.u32 1.1754944e-38, %v842
  %v844 = vsel %vm841, %v843, %v839
  %v845 = vmul.f32 1.0, %v844
  %v846 = vtanh.pop %v826
  %v847 = vsel %vm736, %v845, %v846
  %849 = vrot.lane.b32.xlu0 %v151, 32
  %v850 = vpop.permute.xlu0 %849
  %v852 = vmul.f32 %v847, %v850
  %854 = vrot.lane.b32.xlu0 %v847, 32
  %v855 = vpop.permute.xlu0 %854
  %v857 = vmul.f32 %v847, %v855
  %859 = vrot.lane.b32.xlu0 %v857, 32
  %v860 = vpop.permute.xlu0 %859
  %v862 = vadd.f32 %v852, %v860
  %v863 = vtanh.pop %v862
  %865 = vrot.lane.b32.xlu0 %v863, 32
  %v866 = vpop.permute.xlu0 %865
  %v868 = vmul.f32 %v847, %v866
  %870 = vrot.lane.b32.xlu0 %v868, 64
  %v871 = vpop.permute.xlu0 %870
  %s873 = scalar_lea.vmem [#allocation2], 8
  %874 = vst.msk [vmem:[%s873] sm:$0xff] %vm157, %v871
  %876 = vrot.lane.b32.xlu0 %v862, 96
  %v877 = vpop.permute.xlu0 %876
  %s879 = scalar_lea.vmem [#allocation3], 8
  %880 = vst.msk [vmem:[%s879] sm:$0xff] %vm157, %v877
  %v881 = vld [vmem:[%s7 + $0x40] sm:$0xff]
  %v882 = vld [vmem:[%s7 + $0x48] sm:$0xff]
  %v883 = vld [vmem:[%s7 + $0x50] sm:$0xff]
  %v884 = vld [vmem:[%s7 + $0x58] sm:$0xff]
  %v885 = vld [vmem:[%s7 + $0x60] sm:$0xff]
  %v886 = vld [vmem:[%s7 + $0x68] sm:$0xff]
  %v887 = vld [vmem:[%s7 + $0x70] sm:$0xff]
  %v888 = vld [vmem:[%s7 + $0x78] sm:$0xff]
  %v897 = vsel %vm280, %v614, %v607
  %v898 = vsel %vm282, %v621, %v897
  %v899 = vsel %vm284, %v628, %v898
  %v900 = vsel %vm286, %v635, %v899
  %v901 = vsel %vm288, %v642, %v900
  %v902 = vsel %vm290, %v649, %v901
  %v903 = vsel %vm292, %v656, %v902
  %v904 = vsel %vm157, %v903, 0
  %906 = vmatpush.msra.mxu0 0.0
  %907 = vmatpush.msra.mxu0 0.0
  %908 = vmatpush.msra.mxu0 0.0
  %909 = vmatpush.msra.mxu0 0.0
  %910 = vmatpush.msra.mxu0 0.0
  %911 = vmatpush.msra.mxu0 0.0
  %912 = vmatpush.msra.mxu0 0.0
  %913 = vmatpush.msra.mxu0 0.0
  %914 = vmatpush.msra.mxu0 0.0
  %915 = vmatpush.msra.mxu0 0.0
  %916 = vmatpush.msra.mxu0 0.0
  %917 = vmatpush.msra.mxu0 0.0
  %918 = vmatpush.msra.mxu0 %v888
  %919 = vmatpush.msra.mxu0 %v887
  %920 = vmatpush.msra.mxu0 %v886
  %921 = vmatpush.msra.mxu0 %v885
  %922 = vmatmul.f32.gmra.mxu0 %v904
  %v923 = vpop.f32.mrf.mxu0
  %v924 = vadd.f32 0.0, %v923
  %925 = vdwg.mxu0
  %v926 = vsel %vm157, %v871, 0
  %928 = vmatpush.msra.mxu0 0.0
  %929 = vmatpush.msra.mxu0 0.0
  %930 = vmatpush.msra.mxu0 0.0
  %931 = vmatpush.msra.mxu0 0.0
  %932 = vmatpush.msra.mxu0 0.0
  %933 = vmatpush.msra.mxu0 0.0
  %934 = vmatpush.msra.mxu0 0.0
  %935 = vmatpush.msra.mxu0 0.0
  %936 = vmatpush.msra.mxu0 0.0
  %937 = vmatpush.msra.mxu0 0.0
  %938 = vmatpush.msra.mxu0 0.0
  %939 = vmatpush.msra.mxu0 0.0
  %940 = vmatpush.msra.mxu0 %v884
  %941 = vmatpush.msra.mxu0 %v883
  %942 = vmatpush.msra.mxu0 %v882
  %943 = vmatpush.msra.mxu0 %v881
  %944 = vmatmul.f32.gmra.mxu0 %v926
  %v945 = vpop.f32.mrf.mxu0
  %v946 = vadd.f32 %v924, %v945
  %947 = vdwg.mxu0
  %v948 = vperm.slane %v48, 2
  %v949 = vadd.f32 %v946, %v948
  %v950 = vmax.f32 %v949, 0.0
  %v951 = vld [vmem:[%s9] sm:$0xff]
  %v952 = vld [vmem:[%s9 + $0x8] sm:$0xff]
  %v953 = vld [vmem:[%s9 + $0x10] sm:$0xff]
  %v954 = vld [vmem:[%s9 + $0x18] sm:$0xff]
  %v955 = vld [vmem:[%s10] sm:$0x1]
  %v957 = vperm.slane %v955, 0
  %v960 = vsel %vm157, %v950, 0
  %962 = vmatpush.msra.mxu0 0.0
  %963 = vmatpush.msra.mxu0 0.0
  %964 = vmatpush.msra.mxu0 0.0
  %965 = vmatpush.msra.mxu0 0.0
  %966 = vmatpush.msra.mxu0 0.0
  %967 = vmatpush.msra.mxu0 0.0
  %968 = vmatpush.msra.mxu0 0.0
  %969 = vmatpush.msra.mxu0 0.0
  %970 = vmatpush.msra.mxu0 0.0
  %971 = vmatpush.msra.mxu0 0.0
  %972 = vmatpush.msra.mxu0 0.0
  %973 = vmatpush.msra.mxu0 0.0
  %974 = vmatpush.msra.mxu0 %v954
  %975 = vmatpush.msra.mxu0 %v953
  %976 = vmatpush.msra.mxu0 %v952
  %977 = vmatpush.msra.mxu0 %v951
  %978 = vmatmul.f32.gmra.mxu0 %v960
  %v979 = vpop.f32.mrf.mxu0
  %v980 = vadd.f32 %v957, %v979
  %981 = vdwg.mxu0
  %v982 = vmax.f32 %v980, 0.0
  %v983 = vld [vmem:[%s11] sm:$0xff]
  %v984 = vld [vmem:[%s11 + $0x8] sm:$0xff]
  %v985 = vld [vmem:[%s12] sm:$0x1]
  %v987 = vperm.slane %v985, 0
  %vm989 = vcmask 130048
  %v991 = vsel %vm989, %v982, 0
  %993 = vmatpush.msra.mxu0 0.0
  %994 = vmatpush.msra.mxu0 0.0
  %995 = vmatpush.msra.mxu0 0.0
  %996 = vmatpush.msra.mxu0 0.0
  %997 = vmatpush.msra.mxu0 0.0
  %998 = vmatpush.msra.mxu0 0.0
  %999 = vmatpush.msra.mxu0 0.0
  %1000 = vmatpush.msra.mxu0 0.0
  %1001 = vmatpush.msra.mxu0 0.0
  %1002 = vmatpush.msra.mxu0 0.0
  %1003 = vmatpush.msra.mxu0 0.0
  %1004 = vmatpush.msra.mxu0 0.0
  %1005 = vmatpush.msra.mxu0 0.0
  %1006 = vmatpush.msra.mxu0 0.0
  %1007 = vmatpush.msra.mxu0 %v984
  %1008 = vmatpush.msra.mxu0 %v983
  %1009 = vmatmul.f32.gmra.mxu0 %v991
  %v1010 = vpop.f32.mrf.mxu0
  %v1011 = vadd.f32 %v987, %v1010
  %1012 = vdwg.mxu0
  %1013 = vst.msk [vmem:[%s13] sm:$0xff] %vm295, %v1011
  // Predicated region
  $region58: #{decoder_decode.1} parent=0 // pred_check
    %p1014 = pneg %p49
  $region59: #{decoder_decode.1} parent=0 // pred_check_branch
    %1016 = sbr.rel (%p1014) target = $region61
  $region60: #{decoder_decode.1} parent=0 // pred_region
    %v1017 = vld [vmem:[#allocation2] sm:$0xff]
    %v1018 = vld [vmem:[#allocation2 + $0x8] sm:$0xff]
    %1019 = vst.msk [vmem:[%s14] sm:$0xff] %vm157, %v1017
    %1020 = vst.msk [vmem:[%s14 + $0x8] sm:$0xff] %vm157, %v1018
    %v1021 = vld [vmem:[#allocation3] sm:$0xff]
    %v1022 = vld [vmem:[#allocation3 + $0x8] sm:$0xff]
    %1023 = vst.msk [vmem:[%s15] sm:$0xff] %vm157, %v1021
    %1024 = vst.msk [vmem:[%s15 + $0x8] sm:$0xff] %vm157, %v1022
  $region61: #{decoder_decode.1} parent=0 // pred_fallthru
    _
  // Predicated region
  $region62: #{decoder_decode.1} parent=0 // pred_check
    _
  $region63: #{decoder_decode.1} parent=0 // pred_check_branch
    %1026 = sbr.rel (0) target = $region65
  $region64: #{decoder_decode.1} parent=0 // pred_region
    _
  $region65: #{decoder_decode.1} parent=0 // pred_fallthru
    _
  // Predicated region
  $region66: #{decoder_decode.1} parent=0 // pred_check
    _
  $region67: #{decoder_decode.1} parent=0 // pred_check_branch
    %1028 = sbr.rel (0) target = $region69
  $region68: #{decoder_decode.1} parent=0 // pred_region
    _
  $region69: #{decoder_decode.1} parent=0 // pred_fallthru
    _
  // Predicated region
  $region70: #{decoder_decode.1} parent=0 // pred_check
    _
  $region71: #{decoder_decode.1} parent=0 // pred_check_branch
    %1030 = sbr.rel (0) target = $region73
  $region72: #{decoder_decode.1} parent=0 // pred_region
    _
  $region73: #{decoder_decode.1} parent=0 // pred_fallthru
    _
  // Predicated region
  $region74: #{decoder_decode.1} parent=0 // pred_check
    _
  $region75: #{decoder_decode.1} parent=0 // pred_check_branch
    %1032 = sbr.rel (0) target = $region77
  $region76: #{decoder_decode.1} parent=0 // pred_region
    _
  $region77: #{decoder_decode.1} parent=0 // pred_fallthru
    _
  // Predicated region
  $region78: #{decoder_decode.1} parent=0 // pred_check
    _
  $region79: #{decoder_decode.1} parent=0 // pred_check_branch
    %1034 = sbr.rel (0) target = $region81
  $region80: #{decoder_decode.1} parent=0 // pred_region
    _
  $region81: #{decoder_decode.1} parent=0 // pred_fallthru
    _
  // Predicated region
  $region82: #{decoder_decode.1} parent=0 // pred_check
    _
  $region83: #{decoder_decode.1} parent=0 // pred_check_branch
    %1036 = sbr.rel (0) target = $region85
  $region84: #{decoder_decode.1} parent=0 // pred_region
    _
  $region85: #{decoder_decode.1} parent=0 // pred_fallthru
    _
  // Predicated region
  $region86: #{decoder_decode.1} parent=0 // pred_check
    _
  $region87: #{decoder_decode.1} parent=0 // pred_check_branch
    %1038 = sbr.rel (0) target = $region89
  $region88: #{decoder_decode.1} parent=0 // pred_region
    _
  $region89: #{decoder_decode.1} parent=0 // pred_fallthru
    _
  // Predicated region
  $region90: #{decoder_decode.1} parent=0 // pred_check
    _
  $region91: #{decoder_decode.1} parent=0 // pred_check_branch
    %1040 = sbr.rel (0) target = $region93
  $region92: #{decoder_decode.1} parent=0 // pred_region
    _
  $region93: #{decoder_decode.1} parent=0 // pred_fallthru
    _

</llo_original>
